<compile_context>
chip_gen: v6e
topology: v6e:2x2x1
jax: 0.10.0
libtpu: 0.0.40
codegen_flags: <defaults>
</compile_context>

<pallas_src>
import functools

import jax
import jax.numpy as jnp
from jax.experimental import pallas as pl
from jax.experimental.pallas import tpu as pltpu

LANE = 128
ROW_ALIGN = 16   # bf16 packs 2 rows/sublane -> keep every block row count and
                 # every in-kernel *activation* slice 16-row aligned.


def _round_up(x, m):
    return -(-x // m) * m


def _apply_act(y, act):
    """Activation epilogue (kernel-internal only)."""
    if act == "relu":
        return jnp.maximum(y, 0.0)
    if act == "silu":
        # sigmoid = 1/(1+exp(-y)): exp on the EUP, approx reciprocal also on
        # the EUP slot -> keeps the VALU free for the bias-add/cast epilogue.
        return y * pl.reciprocal(1.0 + jnp.exp(-y), approx=True)
    return y  # "none"


# ----------------------------------------------------------------------------
# Kernel 1: stride-1 3x3 conv, fused over multiple input tensors (skip-concat
# fusion), full 3x3 im2col done in-kernel.
#
# Inputs are flattened padded images Xf[(n*Hp + h)*W2 + w, :] = xpad[n,h,w,:].
# For output row r the conv is sum_{di,dj} Xf[r + di*W2 + dj, :] @ W[di,dj].
# Per grid step the kernel holds a (TM, Cin) row block + a (HALO, Cin) forward
# halo; the di taps are aligned 16-row slices, the dj shifts are applied on the
# f32 partial sums (3 extended accumulators combined with sublane-offset
# slices).  Epilogue = bias + activation, single store.
# ----------------------------------------------------------------------------
def _conv3x3_taps_kernel(*refs, n_inputs, row_pitch, act):
    out_ref = refs[-1]
    b_ref = refs[-2]
    tm, tn = out_ref.shape
    tme = tm + ROW_ALIGN                       # extended rows for the dj shifts
    acc = [jnp.zeros((tme, tn), jnp.float32) for _ in range(3)]
    for idx in range(n_inputs):
        xc = refs[3 * idx][...]                # (TM,   Cin)  current rows
        xh = refs[3 * idx + 1][...]            # (HALO, Cin)  forward halo only
        w_ref = refs[3 * idx + 2]              # (9, Cin, TN)
        xcat = jnp.concatenate([xc, xh], axis=0)      # (TM+HALO, Cin)
        for di in range(3):
            base = di * row_pitch              # multiple of 16 -> aligned slice
            xa = xcat[base:base + tme, :]
            for dj in range(3):
                acc[dj] = acc[dj] + jnp.dot(
                    xa, w_ref[di * 3 + dj], preferred_element_type=jnp.float32)
    y = acc[0][0:tm] + acc[1][1:1 + tm] + acc[2][2:2 + tm] + b_ref[...]
    y = _apply_act(y, act)
    out_ref[...] = y.astype(out_ref.dtype)


def conv3x3_s1_bn_act(inputs, bias, act, out_dtype=jnp.bfloat16):
    """3x3 stride-1 'same' conv, BN scale pre-folded into w, fused bias+act.

    inputs: list of (x, w) pairs sharing N,H,W; the result is the sum of the
            per-pair convs (== conv of the channel-concatenated input), so
            decoder skip-concats are never materialized.
    x: (N,H,W,Cin_i)   w: (3,3,Cin_i,Cout)   bias: (Cout,)
    """
    N, H, W, _ = inputs[0][0].shape
    Cout = inputs[0][1].shape[-1]
    Hp = H + 2
    W2 = _round_up(W + 2, ROW_ALIGN)           # padded row pitch
    halo = 2 * W2 + ROW_ALIGN                  # >= 2*W2 + 2, 16-aligned
    M = N * Hp * W2

    c_pad_total = sum(_round_up(x.shape[-1], LANE) for x, _ in inputs)
    # TM: multiple of `halo` (so the halo block is a plain block index), capped
    # at ~2048 rows and by a per-buffer VMEM budget.
    budget_rows = max(halo, (4 * 1024 * 1024) // (2 * c_pad_total))
    k_tiles = max(1, min(-(-M // halo), max(1, 2048 // halo),
                         budget_rows // halo))
    TM = halo * k_tiles
    n_m = -(-M // TM)
    Mp = n_m * TM
    rows_padded = Mp + TM                      # one spare tile covers the halo

    TN = 256 if Cout >= 256 else LANE          # wide N tile for v6e/v7x MXUs
    Coutp = _round_up(Cout, TN)
    n_n = Coutp // TN

    # deeper pipelining for the small-K / many-step decoder convs and the head
    buffered = pl.Buffered(3) if (c_pad_total <= 2 * LANE and n_m > 1) else None
    kw = {} if buffered is None else {"pipeline_mode": buffered}

    halo_map = lambda i, j: ((i + 1) * k_tiles, 0)

    args, in_specs = [], []
    act_bytes = 0
    flops = 0
    for x, w in inputs:
        C = x.shape[-1]
        xpad = jnp.pad(x.astype(jnp.bfloat16),
                       ((0, 0), (1, 1), (1, W2 - W - 1), (0, 0)))
        xf = xpad.reshape(M, C)
        xf = jnp.pad(xf, ((0, rows_padded - M), (0, 0)))
        wp = jnp.pad(w.astype(jnp.bfloat16).reshape(9, C, Cout),
                     ((0, 0), (0, 0), (0, Coutp - Cout)))
        args += [xf, xf, wp]
        in_specs += [
            pl.BlockSpec((TM, C), lambda i, j: (i, 0), **kw),
            pl.BlockSpec((halo, C), halo_map, **kw),
            pl.BlockSpec((9, C, TN), lambda i, j: (0, 0, j)),
        ]
        act_bytes += (n_n * (Mp + n_m * halo) * C * 2
                      + n_m * n_n * 9 * C * TN * 2)
        flops += 2 * Mp * Coutp * 9 * C

    bp = jnp.pad(bias.astype(jnp.float32).reshape(1, Cout),
                 ((0, 0), (0, Coutp - Cout)))
    args.append(bp)
    in_specs.append(pl.BlockSpec((1, TN), lambda i, j: (0, j)))

    out_bytes = Mp * Coutp * jnp.dtype(out_dtype).itemsize
    out = pl.pallas_call(
        functools.partial(_conv3x3_taps_kernel, n_inputs=len(inputs),
                          row_pitch=W2, act=act),
        out_shape=jax.ShapeDtypeStruct((Mp, Coutp), out_dtype),
        grid_spec=pltpu.PrefetchScalarGridSpec(
            num_scalar_prefetch=0,
            grid=(n_m, n_n),
            in_specs=in_specs,
            out_specs=pl.BlockSpec((TM, TN), lambda i, j: (i, j)),
        ),
        compiler_params=pltpu.CompilerParams(
            dimension_semantics=("parallel", "parallel"),
            vmem_limit_bytes=48 * 1024 * 1024),
        cost_estimate=pl.CostEstimate(
            flops=int(flops),
            transcendentals=int(Mp * Coutp) if act == "silu" else 0,
            bytes_accessed=int(act_bytes + out_bytes + Coutp * 4)),
    )(*args)

    out = out[:M].reshape(N, Hp, W2, Coutp)[:, :H, :W, :Cout]
    return out


# ----------------------------------------------------------------------------
# Kernel 2: single-K-block bf16 matmul + fused bias+act
# (used by the tiny stride-2 encoder convs via im2col)
# ----------------------------------------------------------------------------
def _matmul_bias_act_kernel(x_ref, w_ref, b_ref, o_ref, *, act):
    acc = jnp.dot(x_ref[...], w_ref[...], preferred_element_type=jnp.float32)
    y = _apply_act(acc + b_ref[...], act)
    o_ref[...] = y.astype(o_ref.dtype)


def matmul_bias_act(x, w, bias, act, out_dtype=jnp.bfloat16):
    """act(x @ w + bias) with bf16 operands, f32 accumulate, full-K blocks."""
    M, K = x.shape
    K2, Cout = w.shape
    assert K == K2
    TM = min(512, _round_up(M, ROW_ALIGN))
    TN = LANE
    Kp = _round_up(K, LANE)
    Mp = _round_up(M, TM)
    Np = _round_up(Cout, TN)

    xp = jnp.pad(x.astype(jnp.bfloat16), ((0, Mp - M), (0, Kp - K)))
    wp = jnp.pad(w.astype(jnp.bfloat16), ((0, Kp - K), (0, Np - Cout)))
    bp = jnp.pad(bias.astype(jnp.float32).reshape(1, Cout),
                 ((0, 0), (0, Np - Cout)))

    grid = (Mp // TM, Np // TN)
    out = pl.pallas_call(
        functools.partial(_matmul_bias_act_kernel, act=act),
        out_shape=jax.ShapeDtypeStruct((Mp, Np), out_dtype),
        grid_spec=pltpu.PrefetchScalarGridSpec(
            num_scalar_prefetch=0,
            grid=grid,
            in_specs=[
                pl.BlockSpec((TM, Kp), lambda i, j: (i, 0)),
                pl.BlockSpec((Kp, TN), lambda i, j: (0, j)),
                pl.BlockSpec((1, TN), lambda i, j: (0, j)),
            ],
            out_specs=pl.BlockSpec((TM, TN), lambda i, j: (i, j)),
        ),
        compiler_params=pltpu.CompilerParams(
            dimension_semantics=("parallel", "parallel"),
            vmem_limit_bytes=48 * 1024 * 1024),
        cost_estimate=pl.CostEstimate(
            flops=2 * Mp * Np * Kp,
            transcendentals=(Mp * Np) if act == "silu" else 0,
            bytes_accessed=int(xp.size * 2 + wp.size * 2 + bp.size * 4
                               + Mp * Np * jnp.dtype(out_dtype).itemsize)),
    )(xp, wp, bp)
    return out[:M, :Cout]


def _im2col(x, kh, kw, stride, pad):
    N, H, W, C = x.shape
    xp = jnp.pad(x, ((0, 0), (pad, pad), (pad, pad), (0, 0)))
    Ho = (H + 2 * pad - kh) // stride + 1
    Wo = (W + 2 * pad - kw) // stride + 1
    cols = []
    for di in range(kh):
        for dj in range(kw):
            cols.append(xp[:, di:di + stride * Ho:stride,
                           dj:dj + stride * Wo:stride, :])
    patches = jnp.concatenate(cols, axis=-1)            # (N, Ho, Wo, kh*kw*C)
    return patches.reshape(N * Ho * Wo, kh * kw * C), (N, Ho, Wo)


def conv3x3_s2_bn_act(x, w, bias, act, out_dtype=jnp.bfloat16):
    """3x3 stride-2 conv (encoder stages only; small tensors) via im2col."""
    kh, kw, cin, cout = w.shape
    patches, (N, Ho, Wo) = _im2col(x.astype(jnp.bfloat16), kh, kw, 2, kh // 2)
    out = matmul_bias_act(patches, w.reshape(kh * kw * cin, cout), bias, act,
                          out_dtype=out_dtype)
    return out.reshape(N, Ho, Wo, cout)


def upsample2_nearest(x):
    # TODO(synk): fuse the x2 nearest upsample into the conv1 input path
    # (h//2 mapping) so the 4x-expanded tensor never hits HBM.
    return jnp.repeat(jnp.repeat(x, 2, axis=1), 2, axis=2)


# ----------------------------------------------------------------------------
# Model: parameters and forward pass
# ----------------------------------------------------------------------------
ENC_CH = (3, 32, 24, 48, 120, 352)      # efficientnet-b2 encoder out_channels
DEC_CH = (256, 128, 64, 32, 16)         # smp Unet decoder_channels
BN_EPS = 1e-5


def _init_conv_bn(key, cin, cout):
    k1, k2, k3 = jax.random.split(key, 3)
    w = jax.random.normal(k1, (3, 3, cin, cout), jnp.float32) \
        * (2.0 / (9 * cin)) ** 0.5
    gamma = 1.0 + 0.1 * jax.random.normal(k2, (cout,), jnp.float32)
    beta = 0.1 * jax.random.normal(k3, (cout,), jnp.float32)
    # eval-mode BN (running_mean=0, running_var=1) folded into the conv weight
    scale = gamma / jnp.sqrt(1.0 + BN_EPS)
    return {"w": w * scale[None, None, None, :], "bias": beta}


def init_params(key, in_channels=3, classes=2):
    enc_cin = (in_channels,) + ENC_CH[1:-1]
    enc_cout = ENC_CH[1:]
    enc = []
    for cin, cout in zip(enc_cin, enc_cout):
        key, sub = jax.random.split(key)
        enc.append(_init_conv_bn(sub, cin, cout))

    in_ch = [ENC_CH[-1]] + list(DEC_CH[:-1])
    skip_ch = [ENC_CH[4], ENC_CH[3], ENC_CH[2], ENC_CH[1], 0]
    dec = []
    for i in range(5):
        key, s1, s2 = jax.random.split(key, 3)
        dec.append({
            "conv1": _init_conv_bn(s1, in_ch[i] + skip_ch[i], DEC_CH[i]),
            "conv2": _init_conv_bn(s2, DEC_CH[i], DEC_CH[i]),
        })

    key, kh1, kh2 = jax.random.split(key, 3)
    hw = jax.random.normal(kh1, (3, 3, DEC_CH[-1], classes), jnp.float32) \
        * (2.0 / (9 * DEC_CH[-1])) ** 0.5
    hb = 0.01 * jax.random.normal(kh2, (classes,), jnp.float32)
    head = {"w": hw, "bias": hb}

    return {"enc": enc, "dec": dec, "head": head}


def efficient_unet_forward(params, x_nchw):
    # NCHW -> NHWC
    x = jnp.transpose(x_nchw, (0, 2, 3, 1))

    # ---- encoder (multi-scale features at reductions 2,4,8,16,32) ----
    feats = []
    f = x
    for blk in params["enc"]:
        f = conv3x3_s2_bn_act(f, blk["w"], blk["bias"], act="silu")
        feats.append(f)
    f1, f2, f3, f4, f5 = feats

    # ---- decoder (skip-concat fused into conv1 via per-input weight split) ----
    skips = [f4, f3, f2, f1, None]
    d = f5
    for i, blk in enumerate(params["dec"]):
        d = upsample2_nearest(d)
        w1 = blk["conv1"]["w"]
        cd = d.shape[-1]
        pairs = [(d, w1[:, :, :cd, :])]
        if skips[i] is not None:
            pairs.append((skips[i], w1[:, :, cd:, :]))
        d = conv3x3_s1_bn_act(pairs, blk["conv1"]["bias"], act="relu")
        d = conv3x3_s1_bn_act([(d, blk["conv2"]["w"])], blk["conv2"]["bias"],
                              act="relu")

    # ---- segmentation head (3x3 conv, bias, no activation) ----
    head = params["head"]
    masks = conv3x3_s1_bn_act([(d, head["w"])], head["bias"], act="none",
                              out_dtype=jnp.bfloat16)
    masks = masks.astype(jnp.float32)       # cast after the Cout/spatial slice
    # NHWC -> NCHW
    return jnp.transpose(masks, (0, 3, 1, 2))


# ----------------------------------------------------------------------------
def _conv_ref(x, w, bias, stride, act):
    y = jax.lax.conv_general_dilated(
        x.astype(jnp.bfloat16), w.astype(jnp.bfloat16),
        window_strides=(stride, stride), padding=((1, 1), (1, 1)),
        dimension_numbers=("NHWC", "HWIO", "NHWC"),
        preferred_element_type=jnp.float32)
    y = y + bias.reshape(1, 1, 1, -1)
    if act == "relu":
        return jnp.maximum(y, 0.0)
    if act == "silu":
        return y * jax.nn.sigmoid(y)
    return y


if __name__ == "__main__":
    key = jax.random.PRNGKey(0)
    pkey, xkey, tk1, tk2, tk3 = jax.random.split(key, 5)

    # --- small unit checks of the Pallas conv kernels against lax.conv ---
    tx = jax.random.normal(tk1, (2, 5, 7, 24), jnp.float32)
    tw = jax.random.normal(tk2, (3, 3, 24, 40), jnp.float32) * 0.1
    tb = jax.random.normal(tk3, (40,), jnp.float32)

    ref1 = _conv_ref(tx, tw, tb, 1, "relu")
    got1 = conv3x3_s1_bn_act([(tx, tw)], tb, act="relu",
                             out_dtype=jnp.float32)
    err1 = jnp.max(jnp.abs(got1 - ref1)) / (jnp.max(jnp.abs(ref1)) + 1e-6)
    assert float(err1) < 5e-2, f"stride-1 conv kernel mismatch: {float(err1)}"

    # fused two-input path (decoder skip-concat fusion)
    got1f = conv3x3_s1_bn_act(
        [(tx[..., :10], tw[:, :, :10, :]), (tx[..., 10:], tw[:, :, 10:, :])],
        tb, act="relu", out_dtype=jnp.float32)
    err1f = jnp.max(jnp.abs(got1f - ref1)) / (jnp.max(jnp.abs(ref1)) + 1e-6)
    assert float(err1f) < 5e-2, f"fused conv kernel mismatch: {float(err1f)}"

    got2 = conv3x3_s2_bn_act(tx, tw, tb, act="silu", out_dtype=jnp.float32)
    ref2 = _conv_ref(tx, tw, tb, 2, "silu")
    err2 = jnp.max(jnp.abs(got2 - ref2)) / (jnp.max(jnp.abs(ref2)) + 1e-6)
    assert float(err2) < 5e-2, f"stride-2 conv kernel mismatch: {float(err2)}"

    # --- full model forward ---
    in_channels, classes = 3, 2
    params = init_params(pkey, in_channels=in_channels, classes=classes)
    # spatial must be divisible by 32 (5 stride-2 downsamples)
    x = jax.random.normal(xkey, (2, in_channels, 64, 64), jnp.float32)

    fwd = jax.jit(efficient_unet_forward)
    out = jax.block_until_ready(fwd(params, x))

    assert out.shape == (2, classes, 64, 64), out.shape
    assert jnp.all(jnp.isfinite(out))
    print("KERNEL_OK")
</pallas_src>

<mosaic_0001>
module attributes {stable_mosaic.version = 11 : i64} {
  func.func @_conv3x3_taps_kernel(%arg0: i32, %arg1: i32, %arg2: memref<240x24xbf16, #tpu.memory_space<vmem>>, %arg3: memref<48x24xbf16, #tpu.memory_space<vmem>>, %arg4: memref<9x24x128xbf16, #tpu.memory_space<vmem>>, %arg5: memref<1x128xf32, #tpu.memory_space<vmem>>, %arg6: memref<240x128xf32, #tpu.memory_space<vmem>>) attributes {dimension_semantics = [#tpu.dimension_semantics<parallel>, #tpu.dimension_semantics<parallel>], iteration_bounds = array<i64: 1, 1>, scalar_prefetch = 0 : i64, scratch_operands = 0 : i64, tpu.core_type = #tpu.core_type<tc>, window_params = [{transform_indices = @transform_0, window_bounds = array<i64: 240, 24>}, {transform_indices = @transform_1, window_bounds = array<i64: 48, 24>}, {transform_indices = @transform_2, window_bounds = array<i64: 9, 24, 128>}, {transform_indices = @transform_3, window_bounds = array<i64: 1, 128>}, {transform_indices = @transform_4, window_bounds = array<i64: 240, 128>}]} {
    %cst = arith.constant 0.000000e+00 : f32
    %0 = vector.broadcast %cst : f32 to vector<256x128xf32>
    %cst_0 = arith.constant 0.000000e+00 : f32
    %1 = vector.broadcast %cst_0 : f32 to vector<256x128xf32>
    %cst_1 = arith.constant 0.000000e+00 : f32
    %2 = vector.broadcast %cst_1 : f32 to vector<256x128xf32>
    %c0 = arith.constant 0 : index
    %c0_2 = arith.constant 0 : index
    %3 = vector.load %arg2[%c0, %c0_2] : memref<240x24xbf16, #tpu.memory_space<vmem>>, vector<240x24xbf16>
    %c0_3 = arith.constant 0 : index
    %c0_4 = arith.constant 0 : index
    %4 = vector.load %arg3[%c0_3, %c0_4] : memref<48x24xbf16, #tpu.memory_space<vmem>>, vector<48x24xbf16>
    %5 = tpu.concatenate %3, %4 in 0 : vector<240x24xbf16>, vector<48x24xbf16> -> vector<288x24xbf16>
    %6 = vector.extract_strided_slice %5 {offsets = [0, 0], sizes = [256, 24], strides = [1, 1]} : vector<288x24xbf16> to vector<256x24xbf16>
    %c0_5 = arith.constant 0 : index
    %c0_6 = arith.constant 0 : index
    %c0_7 = arith.constant 0 : index
    %7 = vector.load %arg4[%c0_5, %c0_6, %c0_7] : memref<9x24x128xbf16, #tpu.memory_space<vmem>>, vector<1x24x128xbf16>
    %8 = vector.shape_cast %7 : vector<1x24x128xbf16> to vector<24x128xbf16>
    %cst_8 = arith.constant dense<0.000000e+00> : vector<256x128xf32>
    %9 = tpu.matmul %6, %8, %cst_8 {dimension_numbers = #tpu.dot_dimension_numbers<[1], [0], [0], [1], [0, 0, 1, 1], [], []>} : vector<256x24xbf16>, vector<24x128xbf16>, vector<256x128xf32> -> vector<256x128xf32>
    %10 = arith.addf %0, %9 : vector<256x128xf32>
    %c1 = arith.constant 1 : index
    %c0_9 = arith.constant 0 : index
    %c0_10 = arith.constant 0 : index
    %11 = vector.load %arg4[%c1, %c0_9, %c0_10] : memref<9x24x128xbf16, #tpu.memory_space<vmem>>, vector<1x24x128xbf16>
    %12 = vector.shape_cast %11 : vector<1x24x128xbf16> to vector<24x128xbf16>
    %cst_11 = arith.constant dense<0.000000e+00> : vector<256x128xf32>
    %13 = tpu.matmul %6, %12, %cst_11 {dimension_numbers = #tpu.dot_dimension_numbers<[1], [0], [0], [1], [0, 0, 1, 1], [], []>} : vector<256x24xbf16>, vector<24x128xbf16>, vector<256x128xf32> -> vector<256x128xf32>
    %14 = arith.addf %1, %13 : vector<256x128xf32>
    %c2 = arith.constant 2 : index
    %c0_12 = arith.constant 0 : index
    %c0_13 = arith.constant 0 : index
    %15 = vector.load %arg4[%c2, %c0_12, %c0_13] : memref<9x24x128xbf16, #tpu.memory_space<vmem>>, vector<1x24x128xbf16>
    %16 = vector.shape_cast %15 : vector<1x24x128xbf16> to vector<24x128xbf16>
    %cst_14 = arith.constant dense<0.000000e+00> : vector<256x128xf32>
    %17 = tpu.matmul %6, %16, %cst_14 {dimension_numbers = #tpu.dot_dimension_numbers<[1], [0], [0], [1], [0, 0, 1, 1], [], []>} : vector<256x24xbf16>, vector<24x128xbf16>, vector<256x128xf32> -> vector<256x128xf32>
    %18 = arith.addf %2, %17 : vector<256x128xf32>
    %19 = vector.extract_strided_slice %5 {offsets = [16, 0], sizes = [256, 24], strides = [1, 1]} : vector<288x24xbf16> to vector<256x24xbf16>
    %c3 = arith.constant 3 : index
    %c0_15 = arith.constant 0 : index
    %c0_16 = arith.constant 0 : index
    %20 = vector.load %arg4[%c3, %c0_15, %c0_16] : memref<9x24x128xbf16, #tpu.memory_space<vmem>>, vector<1x24x128xbf16>
    %21 = vector.shape_cast %20 : vector<1x24x128xbf16> to vector<24x128xbf16>
    %cst_17 = arith.constant dense<0.000000e+00> : vector<256x128xf32>
    %22 = tpu.matmul %19, %21, %cst_17 {dimension_numbers = #tpu.dot_dimension_numbers<[1], [0], [0], [1], [0, 0, 1, 1], [], []>} : vector<256x24xbf16>, vector<24x128xbf16>, vector<256x128xf32> -> vector<256x128xf32>
    %23 = arith.addf %10, %22 : vector<256x128xf32>
    %c4 = arith.constant 4 : index
    %c0_18 = arith.constant 0 : index
    %c0_19 = arith.constant 0 : index
    %24 = vector.load %arg4[%c4, %c0_18, %c0_19] : memref<9x24x128xbf16, #tpu.memory_space<vmem>>, vector<1x24x128xbf16>
    %25 = vector.shape_cast %24 : vector<1x24x128xbf16> to vector<24x128xbf16>
    %cst_20 = arith.constant dense<0.000000e+00> : vector<256x128xf32>
    %26 = tpu.matmul %19, %25, %cst_20 {dimension_numbers = #tpu.dot_dimension_numbers<[1], [0], [0], [1], [0, 0, 1, 1], [], []>} : vector<256x24xbf16>, vector<24x128xbf16>, vector<256x128xf32> -> vector<256x128xf32>
    %27 = arith.addf %14, %26 : vector<256x128xf32>
    %c5 = arith.constant 5 : index
    %c0_21 = arith.constant 0 : index
    %c0_22 = arith.constant 0 : index
    %28 = vector.load %arg4[%c5, %c0_21, %c0_22] : memref<9x24x128xbf16, #tpu.memory_space<vmem>>, vector<1x24x128xbf16>
    %29 = vector.shape_cast %28 : vector<1x24x128xbf16> to vector<24x128xbf16>
    %cst_23 = arith.constant dense<0.000000e+00> : vector<256x128xf32>
    %30 = tpu.matmul %19, %29, %cst_23 {dimension_numbers = #tpu.dot_dimension_numbers<[1], [0], [0], [1], [0, 0, 1, 1], [], []>} : vector<256x24xbf16>, vector<24x128xbf16>, vector<256x128xf32> -> vector<256x128xf32>
    %31 = arith.addf %18, %30 : vector<256x128xf32>
    %32 = vector.extract_strided_slice %5 {offsets = [32, 0], sizes = [256, 24], strides = [1, 1]} : vector<288x24xbf16> to vector<256x24xbf16>
    %c6 = arith.constant 6 : index
    %c0_24 = arith.constant 0 : index
    %c0_25 = arith.constant 0 : index
    %33 = vector.load %arg4[%c6, %c0_24, %c0_25] : memref<9x24x128xbf16, #tpu.memory_space<vmem>>, vector<1x24x128xbf16>
    %34 = vector.shape_cast %33 : vector<1x24x128xbf16> to vector<24x128xbf16>
    %cst_26 = arith.constant dense<0.000000e+00> : vector<256x128xf32>
    %35 = tpu.matmul %32, %34, %cst_26 {dimension_numbers = #tpu.dot_dimension_numbers<[1], [0], [0], [1], [0, 0, 1, 1], [], []>} : vector<256x24xbf16>, vector<24x128xbf16>, vector<256x128xf32> -> vector<256x128xf32>
    %36 = arith.addf %23, %35 : vector<256x128xf32>
    %c7 = arith.constant 7 : index
    %c0_27 = arith.constant 0 : index
    %c0_28 = arith.constant 0 : index
    %37 = vector.load %arg4[%c7, %c0_27, %c0_28] : memref<9x24x128xbf16, #tpu.memory_space<vmem>>, vector<1x24x128xbf16>
    %38 = vector.shape_cast %37 : vector<1x24x128xbf16> to vector<24x128xbf16>
    %cst_29 = arith.constant dense<0.000000e+00> : vector<256x128xf32>
    %39 = tpu.matmul %32, %38, %cst_29 {dimension_numbers = #tpu.dot_dimension_numbers<[1], [0], [0], [1], [0, 0, 1, 1], [], []>} : vector<256x24xbf16>, vector<24x128xbf16>, vector<256x128xf32> -> vector<256x128xf32>
    %40 = arith.addf %27, %39 : vector<256x128xf32>
    %c8 = arith.constant 8 : index
    %c0_30 = arith.constant 0 : index
    %c0_31 = arith.constant 0 : index
    %41 = vector.load %arg4[%c8, %c0_30, %c0_31] : memref<9x24x128xbf16, #tpu.memory_space<vmem>>, vector<1x24x128xbf16>
    %42 = vector.shape_cast %41 : vector<1x24x128xbf16> to vector<24x128xbf16>
    %cst_32 = arith.constant dense<0.000000e+00> : vector<256x128xf32>
    %43 = tpu.matmul %32, %42, %cst_32 {dimension_numbers = #tpu.dot_dimension_numbers<[1], [0], [0], [1], [0, 0, 1, 1], [], []>} : vector<256x24xbf16>, vector<24x128xbf16>, vector<256x128xf32> -> vector<256x128xf32>
    %44 = arith.addf %31, %43 : vector<256x128xf32>
    %45 = vector.extract_strided_slice %36 {offsets = [0, 0], sizes = [240, 128], strides = [1, 1]} : vector<256x128xf32> to vector<240x128xf32>
    %46 = vector.extract_strided_slice %40 {offsets = [1, 0], sizes = [240, 128], strides = [1, 1]} : vector<256x128xf32> to vector<240x128xf32>
    %47 = arith.addf %45, %46 : vector<240x128xf32>
    %48 = vector.extract_strided_slice %44 {offsets = [2, 0], sizes = [240, 128], strides = [1, 1]} : vector<256x128xf32> to vector<240x128xf32>
    %49 = arith.addf %47, %48 : vector<240x128xf32>
    %c0_33 = arith.constant 0 : index
    %c0_34 = arith.constant 0 : index
    %50 = vector.load %arg5[%c0_33, %c0_34] : memref<1x128xf32, #tpu.memory_space<vmem>>, vector<1x128xf32>
    %51 = vector.broadcast %50 : vector<1x128xf32> to vector<240x128xf32>
    %52 = arith.addf %49, %51 : vector<240x128xf32>
    %cst_35 = arith.constant 0.000000e+00 : f32
    %53 = vector.broadcast %cst_35 : f32 to vector<240x128xf32>
    %54 = arith.maximumf %52, %53 : vector<240x128xf32>
    %c0_36 = arith.constant 0 : index
    %c0_37 = arith.constant 0 : index
    %55 = vector.load %arg6[%c0_36, %c0_37] : memref<240x128xf32, #tpu.memory_space<vmem>>, vector<240x128xf32>
    tpu.vector_store %arg6[%c0_36, %c0_37], %54 {strides = array<i32>} : memref<240x128xf32, #tpu.memory_space<vmem>>, vector<240x128xf32>,
    return
  }
  func.func @transform_0(%arg0: i32, %arg1: i32) -> (i32, i32) {
    %c0_i32 = arith.constant 0 : i32
    %c0_i32_0 = arith.constant 0 : i32
    return %arg0, %c0_i32 : i32, i32
  }
  func.func @transform_1(%arg0: i32, %arg1: i32) -> (i32, i32) {
    %c1_i32 = arith.constant 1 : i32
    %0 = arith.addi %arg0, %c1_i32 : i32
    %c5_i32 = arith.constant 5 : i32
    %1 = arith.muli %0, %c5_i32 : i32
    %c0_i32 = arith.constant 0 : i32
    %c0_i32_0 = arith.constant 0 : i32
    return %1, %c0_i32 : i32, i32
  }
  func.func @transform_2(%arg0: i32, %arg1: i32) -> (i32, i32, i32) {
    %c0_i32 = arith.constant 0 : i32
    %c0_i32_0 = arith.constant 0 : i32
    %c0_i32_1 = arith.constant 0 : i32
    return %c0_i32, %c0_i32_0, %arg1 : i32, i32, i32
  }
  func.func @transform_3(%arg0: i32, %arg1: i32) -> (i32, i32) {
    %c0_i32 = arith.constant 0 : i32
    %c0_i32_0 = arith.constant 0 : i32
    return %c0_i32, %arg1 : i32, i32
  }
  func.func @transform_4(%arg0: i32, %arg1: i32) -> (i32, i32) {
    %c0_i32 = arith.constant 0 : i32
    return %arg0, %arg1 : i32, i32
  }
}

</mosaic_0001>

<llo_original>
// kernel: tpu_custom_call.1
$region0: #{tpu_custom_call.1}
  #allocation0 [shape = 'u32[]', space=smem, size = 0x4, offset = 0x4, fixed_abs, tag = 'smem constant byte address 0x4 - core index']
  #allocation1 [shape = 'u32[144,128]{1,0:T(1,128)}', space=vmem, size = 0x12000, scoped, tag = 'internal scratch']
  %s0 = inlined_call_operand.vmem [shape: bf16[480,24], index: 0, kind: input, shape index: {}]
  %s1 = inlined_call_operand.vmem [shape: bf16[480,24], index: 1, kind: input, shape index: {}]
  %s2 = inlined_call_operand.vmem [shape: bf16[9,24,128], index: 2, kind: input, shape index: {}]
  %s3 = inlined_call_operand.vmem [shape: f32[1,128], index: 3, kind: input, shape index: {}]
  %s4 = inlined_call_operand.hbm [shape: f32[240,128], index: 4, kind: output, shape index: {}]
  %s5 = sld [smem:[#allocation0]]
  $region26: #{tpu_custom_call.1} parent=0
    _
  %s7 = ssub.s32 1, %s5
  %s8 = scalar_select 0, %s7, %s5
  $region1: #{tpu_custom_call.1} parent=0
    #allocation2 [shape = 'u8[122880]{0}', space=vmem, size = 0x1e000, scoped, tag = 'output window, operand 0, single buffered']
    #allocation3 [shape = 's32[1]{0}', space=sflag, size = 0x4, scoped, tag = 'scoped memory for tpu_custom_call.1']
    %9 = vsyncpa [#allocation3], 0
    // Predicated region
    $region2: #{tpu_custom_call.1} parent=1 // pred_check
      _
    $region3: #{tpu_custom_call.1} parent=1 // pred_check_branch
      %11 = sbr.rel (0) target = $region5
    $region4: #{tpu_custom_call.1} parent=1 // pred_region
      _
    $region5: #{tpu_custom_call.1} parent=1 // pred_fallthru
      _
    // Predicated region
    $region6: #{tpu_custom_call.1} parent=1 // pred_check
      _
    $region7: #{tpu_custom_call.1} parent=1 // pred_check_branch
      %13 = sbr.rel (0) target = $region9
    $region8: #{tpu_custom_call.1} parent=1 // pred_region
      %s14 = sadd.s32 0, 1
      %s15 = smul.u32 %s14, 5
      %s16 = smul.u32 6, %s15
      %p17 = scmp.lt.s32.totalorder %s16, 59
      %s18 = scalar_select %p17, %s16, 59
      %s19 = smul.addr %s18, 4
      %s20 = scalar_lea.vmem %s1, %s19
      %s21 = sadd.s32 0, 1
      %s22 = smul.u32 %s21, 5
      %s23 = smul.u32 6, %s22
    $region9: #{tpu_custom_call.1} parent=1 // pred_fallthru
      _
    // Predicated region
    $region10: #{tpu_custom_call.1} parent=1 // pred_check
      _
    $region11: #{tpu_custom_call.1} parent=1 // pred_check_branch
      %25 = sbr.rel (0) target = $region13
    $region12: #{tpu_custom_call.1} parent=1 // pred_region
      _
    $region13: #{tpu_custom_call.1} parent=1 // pred_fallthru
      _
    // Predicated region
    $region14: #{tpu_custom_call.1} parent=1 // pred_check
      _
    $region15: #{tpu_custom_call.1} parent=1 // pred_check_branch
      %27 = sbr.rel (0) target = $region17
    $region16: #{tpu_custom_call.1} parent=1 // pred_region
      _
    $region17: #{tpu_custom_call.1} parent=1 // pred_fallthru
      _
    %s28 = sadd.s32 0, 1
    %s29 = smul.u32 %s28, 5
    %s30 = smul.u32 6, %s29
    %p31 = scmp.lt.s32.totalorder %s30, 59
    %s32 = scalar_select %p31, %s30, 59
    %s33 = smul.addr %s32, 4
    %s34 = scalar_lea.vmem %s1, %s33
    %s35 = sadd.s32 0, 1
    %s36 = smul.u32 %s35, 5
    %s37 = smul.u32 6, %s36
    %p38 = scmp.lt.s32.totalorder %s37, 59
    %s39 = scalar_select %p38, %s37, 59
    %s40 = smul.addr %s39, 4
    %s41 = scalar_lea.vmem %s1, %s40
    %s42 = sadd.s32 0, 1
    %s43 = smul.u32 %s42, 5
    %s44 = smul.u32 6, %s43
    %v46 = vld [vmem:[%s0] sm:$0xf]
    %v47 = vld [vmem:[%s0 + $0x4] sm:$0xf]
    %v48 = vld [vmem:[%s0 + $0x8] sm:$0xf]
    %v49 = vld [vmem:[%s0 + $0xc] sm:$0xf]
    %v50 = vld [vmem:[%s0 + $0x10] sm:$0xf]
    %v51 = vld [vmem:[%s0 + $0x14] sm:$0xf]
    %v52 = vld [vmem:[%s0 + $0x18] sm:$0xf]
    %v53 = vld [vmem:[%s0 + $0x1c] sm:$0xf]
    %v54 = vld [vmem:[%s0 + $0x20] sm:$0xf]
    %v55 = vld [vmem:[%s0 + $0x24] sm:$0xf]
    %v56 = vld [vmem:[%s0 + $0x28] sm:$0xf]
    %v57 = vld [vmem:[%s0 + $0x2c] sm:$0xf]
    %v58 = vld [vmem:[%s0 + $0x30] sm:$0xf]
    %v59 = vld [vmem:[%s0 + $0x34] sm:$0xf]
    %v60 = vld [vmem:[%s0 + $0x38] sm:$0xf]
    %v61 = vld [vmem:[%s0 + $0x3c] sm:$0xf]
    %v62 = vld [vmem:[%s0 + $0x40] sm:$0xf]
    %v63 = vld [vmem:[%s0 + $0x44] sm:$0xf]
    %v64 = vld [vmem:[%s0 + $0x48] sm:$0xf]
    %v65 = vld [vmem:[%s0 + $0x4c] sm:$0xf]
    %v66 = vld [vmem:[%s0 + $0x50] sm:$0xf]
    %v67 = vld [vmem:[%s0 + $0x54] sm:$0xf]
    %v68 = vld [vmem:[%s0 + $0x58] sm:$0xf]
    %v69 = vld [vmem:[%s0 + $0x5c] sm:$0xf]
    %v70 = vld [vmem:[%s0 + $0x60] sm:$0xf]
    %v71 = vld [vmem:[%s0 + $0x64] sm:$0xf]
    %v72 = vld [vmem:[%s0 + $0x68] sm:$0xf]
    %v73 = vld [vmem:[%s0 + $0x6c] sm:$0xf]
    %v74 = vld [vmem:[%s0 + $0x70] sm:$0xf]
    %v75 = vld [vmem:[%s0 + $0x74] sm:$0xf]
    %v76 = vld [vmem:[%s41] sm:$0xf]
    %v77 = vld [vmem:[%s41 + $0x4] sm:$0xf]
    %v78 = vld [vmem:[%s41 + $0x8] sm:$0xf]
    %v79 = vld [vmem:[%s41 + $0xc] sm:$0xf]
    %v80 = vld [vmem:[%s41 + $0x10] sm:$0xf]
    %v81 = vld [vmem:[%s41 + $0x14] sm:$0xf]
    %v112 = vunpack.c.l.b16 %v46
    %v113 = vunpack.c.l.b16 %v47
    %v114 = vunpack.c.l.b16 %v48
    %v115 = vunpack.c.l.b16 %v49
    %v116 = vunpack.c.l.b16 %v50
    %v117 = vunpack.c.l.b16 %v51
    %v118 = vunpack.c.l.b16 %v52
    %v119 = vunpack.c.l.b16 %v53
    %v120 = vunpack.c.l.b16 %v54
    %v121 = vunpack.c.l.b16 %v55
    %v122 = vunpack.c.l.b16 %v56
    %v123 = vunpack.c.l.b16 %v57
    %v124 = vunpack.c.l.b16 %v58
    %v125 = vunpack.c.l.b16 %v59
    %v126 = vunpack.c.l.b16 %v60
    %v127 = vunpack.c.l.b16 %v61
    %v128 = vunpack.c.l.b16 %v62
    %v129 = vunpack.c.l.b16 %v63
    %v130 = vunpack.c.l.b16 %v64
    %v131 = vunpack.c.l.b16 %v65
    %v132 = vunpack.c.l.b16 %v66
    %v133 = vunpack.c.l.b16 %v67
    %v134 = vunpack.c.l.b16 %v68
    %v135 = vunpack.c.l.b16 %v69
    %v136 = vunpack.c.l.b16 %v70
    %v137 = vunpack.c.l.b16 %v71
    %v138 = vunpack.c.l.b16 %v72
    %v139 = vunpack.c.l.b16 %v73
    %v140 = vunpack.c.l.b16 %v74
    %v141 = vunpack.c.l.b16 %v75
    %v142 = vpack.c.b16 %v113, %v112
    %v143 = vpack.c.b16 %v115, %v114
    %v144 = vpack.c.b16 %v117, %v116
    %v145 = vpack.c.b16 %v119, %v118
    %v146 = vpack.c.b16 %v121, %v120
    %v147 = vpack.c.b16 %v123, %v122
    %v148 = vpack.c.b16 %v125, %v124
    %v149 = vpack.c.b16 %v127, %v126
    %v150 = vpack.c.b16 %v129, %v128
    %v151 = vpack.c.b16 %v131, %v130
    %v152 = vpack.c.b16 %v133, %v132
    %v153 = vpack.c.b16 %v135, %v134
    %v154 = vpack.c.b16 %v137, %v136
    %v155 = vpack.c.b16 %v139, %v138
    %v156 = vpack.c.b16 %v141, %v140
    %v163 = vunpack.c.l.b16 %v76
    %v164 = vunpack.c.l.b16 %v77
    %v165 = vunpack.c.l.b16 %v78
    %v166 = vunpack.c.l.b16 %v79
    %v167 = vunpack.c.l.b16 %v80
    %v168 = vunpack.c.l.b16 %v81
    %v169 = vpack.c.b16 %v164, %v163
    %v170 = vpack.c.b16 %v166, %v165
    %v171 = vpack.c.b16 %v168, %v167
    %v172 = vld [vmem:[%s2] sm:$0xf]
    %v173 = vld [vmem:[%s2 + $0x4] sm:$0xf]
    %v174 = vld [vmem:[%s2 + $0x8] sm:$0xf]
    %s175 = scalar_lea.vmem %s2, 12
    %v176 = vld [vmem:[%s175] sm:$0xf]
    %v177 = vld [vmem:[%s175 + $0x4] sm:$0xf]
    %v178 = vld [vmem:[%s175 + $0x8] sm:$0xf]
    %s179 = scalar_lea.vmem %s2, 24
    %v180 = vld [vmem:[%s179] sm:$0xf]
    %v181 = vld [vmem:[%s179 + $0x4] sm:$0xf]
    %v182 = vld [vmem:[%s179 + $0x8] sm:$0xf]
    %s183 = scalar_lea.vmem %s2, 36
    %v184 = vld [vmem:[%s183] sm:$0xf]
    %v185 = vld [vmem:[%s183 + $0x4] sm:$0xf]
    %v186 = vld [vmem:[%s183 + $0x8] sm:$0xf]
    %v190 = vunpack.c.l.b16 %v184
    %v191 = vunpack.c.l.b16 %v185
    %v192 = vunpack.c.l.b16 %v186
    %v193 = vpack.c.b16 %v191, %v190
    %v194 = vpack.c.b16 %v192, %v192
    %vm196 = vcmask 195584
    %v198 = vsel %vm196, %v143, 0
    %v201 = vsel %vm196, %v144, 0
    %v204 = vsel %vm196, %v145, 0
    %v207 = vsel %vm196, %v146, 0
    %v210 = vsel %vm196, %v147, 0
    %v213 = vsel %vm196, %v148, 0
    %v216 = vsel %vm196, %v149, 0
    %v219 = vsel %vm196, %v150, 0
    %v222 = vsel %vm196, %v151, 0
    %v225 = vsel %vm196, %v152, 0
    %v228 = vsel %vm196, %v153, 0
    %v231 = vsel %vm196, %v154, 0
    %v234 = vsel %vm196, %v155, 0
    %v237 = vsel %vm196, %v156, 0
    %v240 = vsel %vm196, %v169, 0
    %v243 = vsel %vm196, %v170, 0
    %vm245 = vcmask 1043456
    %v247 = vsel %vm245, %v194, 0
    %249 = vmatprep.subr.bf16.mxu0 0
    %250 = vmatpush1.bf16.msra.mxu0 0
    %251 = vmatprep.subr.bf16.mxu0 0
    %252 = vmatpush1.bf16.msra.mxu0 0
    %253 = vmatprep.subr.bf16.mxu0 0
    %254 = vmatpush1.bf16.msra.mxu0 0
    %255 = vmatprep.subr.bf16.mxu0 0
    %256 = vmatpush1.bf16.msra.mxu0 0
    %257 = vmatprep.subr.bf16.mxu0 0
    %258 = vmatpush1.bf16.msra.mxu0 0
    %259 = vmatprep.subr.bf16.mxu0 0
    %260 = vmatpush1.bf16.msra.mxu0 0
    %261 = vmatprep.subr.bf16.mxu0 0
    %262 = vmatpush1.bf16.msra.mxu0 %v247
    %263 = vmatprep.subr.bf16.mxu0 0
    %264 = vmatpush1.bf16.msra.mxu0 %v193
    %265 = vmatprep.subr.bf16.mxu0 0
    %266 = vmatpush2.bf16.msra.mxu0 0
    %267 = vmatprep.subr.bf16.mxu0 0
    %268 = vmatpush2.bf16.msra.mxu0 0
    %269 = vmatprep.subr.bf16.mxu0 0
    %270 = vmatpush2.bf16.msra.mxu0 0
    %271 = vmatprep.subr.bf16.mxu0 0
    %272 = vmatpush2.bf16.msra.mxu0 0
    %273 = vmatprep.subr.bf16.mxu0 0
    %274 = vmatpush2.bf16.msra.mxu0 0
    %275 = vmatprep.subr.bf16.mxu0 0
    %276 = vmatpush2.bf16.msra.mxu0 0
    %277 = vmatprep.subr.bf16.mxu0 0
    %278 = vmatpush2.bf16.msra.mxu0 0
    %279 = vmatprep.subr.bf16.mxu0 0
    %280 = vmatpush2.bf16.msra.mxu0 0
    %281 = vmatprep.mubr.bf16.mxu0 0
    %282 = vmatmul.mubr.bf16.gmra.mxu0 %v198
    %v283 = vpop.f32.mrf.mxu0
    %v284 = vadd.f32 0.0, %v283
    %v285 = vpop.f32.mrf.mxu0
    %v286 = vpop.f32.mrf.mxu0
    %v287 = vadd.f32 0.0, %v286
    %v288 = vpop.f32.mrf.mxu0
    %289 = vmatprep.mubr.bf16.mxu0 0
    %290 = vmatmul.mubr.bf16.gmra.mxu0 %v201
    %v291 = vpop.f32.mrf.mxu0
    %v292 = vadd.f32 0.0, %v291
    %v293 = vpop.f32.mrf.mxu0
    %v294 = vpop.f32.mrf.mxu0
    %v295 = vadd.f32 0.0, %v294
    %v296 = vpop.f32.mrf.mxu0
    %297 = vmatprep.mubr.bf16.mxu0 0
    %298 = vmatmul.mubr.bf16.gmra.mxu0 %v204
    %v299 = vpop.f32.mrf.mxu0
    %v300 = vadd.f32 0.0, %v299
    %v301 = vpop.f32.mrf.mxu0
    %v302 = vpop.f32.mrf.mxu0
    %v303 = vadd.f32 0.0, %v302
    %v304 = vpop.f32.mrf.mxu0
    %305 = vmatprep.mubr.bf16.mxu0 0
    %306 = vmatmul.mubr.bf16.gmra.mxu0 %v207
    %v307 = vpop.f32.mrf.mxu0
    %v308 = vadd.f32 0.0, %v307
    %v309 = vpop.f32.mrf.mxu0
    %v310 = vpop.f32.mrf.mxu0
    %v311 = vadd.f32 0.0, %v310
    %v312 = vpop.f32.mrf.mxu0
    %313 = vmatprep.mubr.bf16.mxu0 0
    %314 = vmatmul.mubr.bf16.gmra.mxu0 %v210
    %v315 = vpop.f32.mrf.mxu0
    %v316 = vadd.f32 0.0, %v315
    %v317 = vpop.f32.mrf.mxu0
    %v318 = vpop.f32.mrf.mxu0
    %v319 = vadd.f32 0.0, %v318
    %v320 = vpop.f32.mrf.mxu0
    %321 = vmatprep.mubr.bf16.mxu0 0
    %322 = vmatmul.mubr.bf16.gmra.mxu0 %v213
    %v323 = vpop.f32.mrf.mxu0
    %v324 = vadd.f32 0.0, %v323
    %v325 = vpop.f32.mrf.mxu0
    %v326 = vpop.f32.mrf.mxu0
    %v327 = vadd.f32 0.0, %v326
    %v328 = vpop.f32.mrf.mxu0
    %329 = vmatprep.mubr.bf16.mxu0 0
    %330 = vmatmul.mubr.bf16.gmra.mxu0 %v216
    %v331 = vpop.f32.mrf.mxu0
    %v332 = vadd.f32 0.0, %v331
    %v333 = vpop.f32.mrf.mxu0
    %v334 = vpop.f32.mrf.mxu0
    %v335 = vadd.f32 0.0, %v334
    %v336 = vpop.f32.mrf.mxu0
    %337 = vmatprep.mubr.bf16.mxu0 0
    %338 = vmatmul.mubr.bf16.gmra.mxu0 %v219
    %v339 = vpop.f32.mrf.mxu0
    %v340 = vadd.f32 0.0, %v339
    %v341 = vpop.f32.mrf.mxu0
    %v342 = vpop.f32.mrf.mxu0
    %v343 = vadd.f32 0.0, %v342
    %v344 = vpop.f32.mrf.mxu0
    %345 = vmatprep.mubr.bf16.mxu0 0
    %346 = vmatmul.mubr.bf16.gmra.mxu0 %v222
    %v347 = vpop.f32.mrf.mxu0
    %v348 = vadd.f32 0.0, %v347
    %v349 = vpop.f32.mrf.mxu0
    %v350 = vpop.f32.mrf.mxu0
    %v351 = vadd.f32 0.0, %v350
    %v352 = vpop.f32.mrf.mxu0
    %353 = vmatprep.mubr.bf16.mxu0 0
    %354 = vmatmul.mubr.bf16.gmra.mxu0 %v225
    %v355 = vpop.f32.mrf.mxu0
    %v356 = vadd.f32 0.0, %v355
    %v357 = vpop.f32.mrf.mxu0
    %v358 = vpop.f32.mrf.mxu0
    %v359 = vadd.f32 0.0, %v358
    %v360 = vpop.f32.mrf.mxu0
    %361 = vmatprep.mubr.bf16.mxu0 0
    %362 = vmatmul.mubr.bf16.gmra.mxu0 %v228
    %v363 = vpop.f32.mrf.mxu0
    %v364 = vadd.f32 0.0, %v363
    %v365 = vpop.f32.mrf.mxu0
    %v366 = vpop.f32.mrf.mxu0
    %v367 = vadd.f32 0.0, %v366
    %v368 = vpop.f32.mrf.mxu0
    %369 = vmatprep.mubr.bf16.mxu0 0
    %370 = vmatmul.mubr.bf16.gmra.mxu0 %v231
    %v371 = vpop.f32.mrf.mxu0
    %v372 = vadd.f32 0.0, %v371
    %v373 = vpop.f32.mrf.mxu0
    %v374 = vpop.f32.mrf.mxu0
    %v375 = vadd.f32 0.0, %v374
    %v376 = vpop.f32.mrf.mxu0
    %377 = vmatprep.mubr.bf16.mxu0 0
    %378 = vmatmul.mubr.bf16.gmra.mxu0 %v234
    %v379 = vpop.f32.mrf.mxu0
    %v380 = vadd.f32 0.0, %v379
    %v381 = vpop.f32.mrf.mxu0
    %v382 = vpop.f32.mrf.mxu0
    %v383 = vadd.f32 0.0, %v382
    %v384 = vpop.f32.mrf.mxu0
    %385 = vmatprep.mubr.bf16.mxu0 0
    %386 = vmatmul.mubr.bf16.gmra.mxu0 %v237
    %v387 = vpop.f32.mrf.mxu0
    %v388 = vadd.f32 0.0, %v387
    %v389 = vpop.f32.mrf.mxu0
    %v390 = vpop.f32.mrf.mxu0
    %v391 = vadd.f32 0.0, %v390
    %v392 = vpop.f32.mrf.mxu0
    %393 = vmatprep.mubr.bf16.mxu0 0
    %394 = vmatmul.mubr.bf16.gmra.mxu0 %v240
    %v395 = vpop.f32.mrf.mxu0
    %v396 = vadd.f32 0.0, %v395
    %v397 = vpop.f32.mrf.mxu0
    %v398 = vpop.f32.mrf.mxu0
    %v399 = vadd.f32 0.0, %v398
    %v400 = vpop.f32.mrf.mxu0
    %401 = vmatprep.mubr.bf16.mxu0 0
    %402 = vmatmul.mubr.bf16.gmra.mxu0 %v243
    %v403 = vpop.f32.mrf.mxu0
    %v404 = vpop.f32.mrf.mxu0
    %v405 = vpop.f32.mrf.mxu0
    %v406 = vpop.f32.mrf.mxu0
    %407 = vdwg.mxu0
    %v411 = vunpack.c.l.b16 %v172
    %v412 = vunpack.c.l.b16 %v173
    %v413 = vunpack.c.l.b16 %v174
    %v414 = vpack.c.b16 %v412, %v411
    %v415 = vpack.c.b16 %v413, %v413
    %v418 = vsel %vm196, %v142, 0
    %v421 = vsel %vm245, %v415, 0
    %423 = vmatprep.subr.bf16.mxu0 0
    %424 = vmatpush1.bf16.msra.mxu0 0
    %425 = vmatprep.subr.bf16.mxu0 0
    %426 = vmatpush1.bf16.msra.mxu0 0
    %427 = vmatprep.subr.bf16.mxu0 0
    %428 = vmatpush1.bf16.msra.mxu0 0
    %429 = vmatprep.subr.bf16.mxu0 0
    %430 = vmatpush1.bf16.msra.mxu0 0
    %431 = vmatprep.subr.bf16.mxu0 0
    %432 = vmatpush1.bf16.msra.mxu0 0
    %433 = vmatprep.subr.bf16.mxu0 0
    %434 = vmatpush1.bf16.msra.mxu0 0
    %435 = vmatprep.subr.bf16.mxu0 0
    %436 = vmatpush1.bf16.msra.mxu0 %v421
    %437 = vmatprep.subr.bf16.mxu0 0
    %438 = vmatpush1.bf16.msra.mxu0 %v414
    %439 = vmatprep.subr.bf16.mxu0 0
    %440 = vmatpush2.bf16.msra.mxu0 0
    %441 = vmatprep.subr.bf16.mxu0 0
    %442 = vmatpush2.bf16.msra.mxu0 0
    %443 = vmatprep.subr.bf16.mxu0 0
    %444 = vmatpush2.bf16.msra.mxu0 0
    %445 = vmatprep.subr.bf16.mxu0 0
    %446 = vmatpush2.bf16.msra.mxu0 0
    %447 = vmatprep.subr.bf16.mxu0 0
    %448 = vmatpush2.bf16.msra.mxu0 0
    %449 = vmatprep.subr.bf16.mxu0 0
    %450 = vmatpush2.bf16.msra.mxu0 0
    %451 = vmatprep.subr.bf16.mxu0 0
    %452 = vmatpush2.bf16.msra.mxu0 0
    %453 = vmatprep.subr.bf16.mxu0 0
    %454 = vmatpush2.bf16.msra.mxu0 0
    %455 = vmatprep.mubr.bf16.mxu0 0
    %456 = vmatmul.mubr.bf16.gmra.mxu0 %v418
    %v457 = vpop.f32.mrf.mxu0
    %v458 = vadd.f32 %v284, %v457
    %v459 = vpop.f32.mrf.mxu0
    %v460 = vpop.f32.mrf.mxu0
    %v461 = vadd.f32 %v287, %v460
    %v462 = vpop.f32.mrf.mxu0
    %463 = vmatprep.mubr.bf16.mxu0 0
    %464 = vmatmul.mubr.bf16.gmra.mxu0 %v198
    %v465 = vpop.f32.mrf.mxu0
    %v466 = vadd.f32 %v292, %v465
    %v467 = vpop.f32.mrf.mxu0
    %v468 = vpop.f32.mrf.mxu0
    %v469 = vadd.f32 %v295, %v468
    %v470 = vpop.f32.mrf.mxu0
    %471 = vmatprep.mubr.bf16.mxu0 0
    %472 = vmatmul.mubr.bf16.gmra.mxu0 %v201
    %v473 = vpop.f32.mrf.mxu0
    %v474 = vadd.f32 %v300, %v473
    %v475 = vpop.f32.mrf.mxu0
    %v476 = vpop.f32.mrf.mxu0
    %v477 = vadd.f32 %v303, %v476
    %v478 = vpop.f32.mrf.mxu0
    %479 = vmatprep.mubr.bf16.mxu0 0
    %480 = vmatmul.mubr.bf16.gmra.mxu0 %v204
    %v481 = vpop.f32.mrf.mxu0
    %v482 = vadd.f32 %v308, %v481
    %v483 = vpop.f32.mrf.mxu0
    %v484 = vpop.f32.mrf.mxu0
    %v485 = vadd.f32 %v311, %v484
    %v486 = vpop.f32.mrf.mxu0
    %487 = vmatprep.mubr.bf16.mxu0 0
    %488 = vmatmul.mubr.bf16.gmra.mxu0 %v207
    %v489 = vpop.f32.mrf.mxu0
    %v490 = vadd.f32 %v316, %v489
    %v491 = vpop.f32.mrf.mxu0
    %v492 = vpop.f32.mrf.mxu0
    %v493 = vadd.f32 %v319, %v492
    %v494 = vpop.f32.mrf.mxu0
    %495 = vmatprep.mubr.bf16.mxu0 0
    %496 = vmatmul.mubr.bf16.gmra.mxu0 %v210
    %v497 = vpop.f32.mrf.mxu0
    %v498 = vadd.f32 %v324, %v497
    %v499 = vpop.f32.mrf.mxu0
    %v500 = vpop.f32.mrf.mxu0
    %v501 = vadd.f32 %v327, %v500
    %v502 = vpop.f32.mrf.mxu0
    %503 = vmatprep.mubr.bf16.mxu0 0
    %504 = vmatmul.mubr.bf16.gmra.mxu0 %v213
    %v505 = vpop.f32.mrf.mxu0
    %v506 = vadd.f32 %v332, %v505
    %v507 = vpop.f32.mrf.mxu0
    %v508 = vpop.f32.mrf.mxu0
    %v509 = vadd.f32 %v335, %v508
    %v510 = vpop.f32.mrf.mxu0
    %511 = vmatprep.mubr.bf16.mxu0 0
    %512 = vmatmul.mubr.bf16.gmra.mxu0 %v216
    %v513 = vpop.f32.mrf.mxu0
    %v514 = vadd.f32 %v340, %v513
    %v515 = vpop.f32.mrf.mxu0
    %v516 = vpop.f32.mrf.mxu0
    %v517 = vadd.f32 %v343, %v516
    %v518 = vpop.f32.mrf.mxu0
    %519 = vmatprep.mubr.bf16.mxu0 0
    %520 = vmatmul.mubr.bf16.gmra.mxu0 %v219
    %v521 = vpop.f32.mrf.mxu0
    %v522 = vadd.f32 %v348, %v521
    %v523 = vpop.f32.mrf.mxu0
    %v524 = vpop.f32.mrf.mxu0
    %v525 = vadd.f32 %v351, %v524
    %v526 = vpop.f32.mrf.mxu0
    %527 = vmatprep.mubr.bf16.mxu0 0
    %528 = vmatmul.mubr.bf16.gmra.mxu0 %v222
    %v529 = vpop.f32.mrf.mxu0
    %v530 = vadd.f32 %v356, %v529
    %v531 = vpop.f32.mrf.mxu0
    %v532 = vpop.f32.mrf.mxu0
    %v533 = vadd.f32 %v359, %v532
    %v534 = vpop.f32.mrf.mxu0
    %535 = vmatprep.mubr.bf16.mxu0 0
    %536 = vmatmul.mubr.bf16.gmra.mxu0 %v225
    %v537 = vpop.f32.mrf.mxu0
    %v538 = vadd.f32 %v364, %v537
    %v539 = vpop.f32.mrf.mxu0
    %v540 = vpop.f32.mrf.mxu0
    %v541 = vadd.f32 %v367, %v540
    %v542 = vpop.f32.mrf.mxu0
    %543 = vmatprep.mubr.bf16.mxu0 0
    %544 = vmatmul.mubr.bf16.gmra.mxu0 %v228
    %v545 = vpop.f32.mrf.mxu0
    %v546 = vadd.f32 %v372, %v545
    %v547 = vpop.f32.mrf.mxu0
    %v548 = vpop.f32.mrf.mxu0
    %v549 = vadd.f32 %v375, %v548
    %v550 = vpop.f32.mrf.mxu0
    %551 = vmatprep.mubr.bf16.mxu0 0
    %552 = vmatmul.mubr.bf16.gmra.mxu0 %v231
    %v553 = vpop.f32.mrf.mxu0
    %v554 = vadd.f32 %v380, %v553
    %v555 = vpop.f32.mrf.mxu0
    %v556 = vpop.f32.mrf.mxu0
    %v557 = vadd.f32 %v383, %v556
    %v558 = vpop.f32.mrf.mxu0
    %559 = vmatprep.mubr.bf16.mxu0 0
    %560 = vmatmul.mubr.bf16.gmra.mxu0 %v234
    %v561 = vpop.f32.mrf.mxu0
    %v562 = vadd.f32 %v388, %v561
    %v563 = vpop.f32.mrf.mxu0
    %v564 = vpop.f32.mrf.mxu0
    %v565 = vadd.f32 %v391, %v564
    %v566 = vpop.f32.mrf.mxu0
    %567 = vmatprep.mubr.bf16.mxu0 0
    %568 = vmatmul.mubr.bf16.gmra.mxu0 %v237
    %v569 = vpop.f32.mrf.mxu0
    %v570 = vadd.f32 %v396, %v569
    %v571 = vpop.f32.mrf.mxu0
    %v572 = vpop.f32.mrf.mxu0
    %v573 = vadd.f32 %v399, %v572
    %v574 = vpop.f32.mrf.mxu0
    %575 = vmatprep.mubr.bf16.mxu0 0
    %576 = vmatmul.mubr.bf16.gmra.mxu0 %v240
    %v577 = vpop.f32.mrf.mxu0
    %v578 = vpop.f32.mrf.mxu0
    %v579 = vpop.f32.mrf.mxu0
    %v580 = vpop.f32.mrf.mxu0
    %581 = vdwg.mxu0
    %s582 = scalar_lea.vmem %s2, 48
    %v583 = vld [vmem:[%s582] sm:$0xf]
    %v584 = vld [vmem:[%s582 + $0x4] sm:$0xf]
    %v585 = vld [vmem:[%s582 + $0x8] sm:$0xf]
    %v589 = vunpack.c.l.b16 %v583
    %v590 = vunpack.c.l.b16 %v584
    %v591 = vunpack.c.l.b16 %v585
    %v592 = vpack.c.b16 %v590, %v589
    %v593 = vpack.c.b16 %v591, %v591
    %v596 = vsel %vm245, %v593, 0
    %598 = vmatprep.subr.bf16.mxu0 0
    %599 = vmatpush1.bf16.msra.mxu0 0
    %600 = vmatprep.subr.bf16.mxu0 0
    %601 = vmatpush1.bf16.msra.mxu0 0
    %602 = vmatprep.subr.bf16.mxu0 0
    %603 = vmatpush1.bf16.msra.mxu0 0
    %604 = vmatprep.subr.bf16.mxu0 0
    %605 = vmatpush1.bf16.msra.mxu0 0
    %606 = vmatprep.subr.bf16.mxu0 0
    %607 = vmatpush1.bf16.msra.mxu0 0
    %608 = vmatprep.subr.bf16.mxu0 0
    %609 = vmatpush1.bf16.msra.mxu0 0
    %610 = vmatprep.subr.bf16.mxu0 0
    %611 = vmatpush1.bf16.msra.mxu0 %v596
    %612 = vmatprep.subr.bf16.mxu0 0
    %613 = vmatpush1.bf16.msra.mxu0 %v592
    %614 = vmatprep.subr.bf16.mxu0 0
    %615 = vmatpush2.bf16.msra.mxu0 0
    %616 = vmatprep.subr.bf16.mxu0 0
    %617 = vmatpush2.bf16.msra.mxu0 0
    %618 = vmatprep.subr.bf16.mxu0 0
    %619 = vmatpush2.bf16.msra.mxu0 0
    %620 = vmatprep.subr.bf16.mxu0 0
    %621 = vmatpush2.bf16.msra.mxu0 0
    %622 = vmatprep.subr.bf16.mxu0 0
    %623 = vmatpush2.bf16.msra.mxu0 0
    %624 = vmatprep.subr.bf16.mxu0 0
    %625 = vmatpush2.bf16.msra.mxu0 0
    %626 = vmatprep.subr.bf16.mxu0 0
    %627 = vmatpush2.bf16.msra.mxu0 0
    %628 = vmatprep.subr.bf16.mxu0 0
    %629 = vmatpush2.bf16.msra.mxu0 0
    %630 = vmatprep.mubr.bf16.mxu0 0
    %631 = vmatmul.mubr.bf16.gmra.mxu0 %v198
    %v632 = vpop.f32.mrf.mxu0
    %v633 = vadd.f32 0.0, %v632
    %v634 = vpop.f32.mrf.mxu0
    %v635 = vpop.f32.mrf.mxu0
    %v636 = vadd.f32 0.0, %v635
    %v637 = vpop.f32.mrf.mxu0
    %638 = vmatprep.mubr.bf16.mxu0 0
    %639 = vmatmul.mubr.bf16.gmra.mxu0 %v201
    %v640 = vpop.f32.mrf.mxu0
    %v641 = vadd.f32 0.0, %v640
    %v642 = vpop.f32.mrf.mxu0
    %v643 = vpop.f32.mrf.mxu0
    %v644 = vadd.f32 0.0, %v643
    %v645 = vpop.f32.mrf.mxu0
    %646 = vmatprep.mubr.bf16.mxu0 0
    %647 = vmatmul.mubr.bf16.gmra.mxu0 %v204
    %v648 = vpop.f32.mrf.mxu0
    %v649 = vadd.f32 0.0, %v648
    %v650 = vpop.f32.mrf.mxu0
    %v651 = vpop.f32.mrf.mxu0
    %v652 = vadd.f32 0.0, %v651
    %v653 = vpop.f32.mrf.mxu0
    %654 = vmatprep.mubr.bf16.mxu0 0
    %655 = vmatmul.mubr.bf16.gmra.mxu0 %v207
    %v656 = vpop.f32.mrf.mxu0
    %v657 = vadd.f32 0.0, %v656
    %v658 = vpop.f32.mrf.mxu0
    %v659 = vpop.f32.mrf.mxu0
    %v660 = vadd.f32 0.0, %v659
    %v661 = vpop.f32.mrf.mxu0
    %662 = vmatprep.mubr.bf16.mxu0 0
    %663 = vmatmul.mubr.bf16.gmra.mxu0 %v210
    %v664 = vpop.f32.mrf.mxu0
    %v665 = vadd.f32 0.0, %v664
    %v666 = vpop.f32.mrf.mxu0
    %v667 = vpop.f32.mrf.mxu0
    %v668 = vadd.f32 0.0, %v667
    %v669 = vpop.f32.mrf.mxu0
    %670 = vmatprep.mubr.bf16.mxu0 0
    %671 = vmatmul.mubr.bf16.gmra.mxu0 %v213
    %v672 = vpop.f32.mrf.mxu0
    %v673 = vadd.f32 0.0, %v672
    %v674 = vpop.f32.mrf.mxu0
    %v675 = vpop.f32.mrf.mxu0
    %v676 = vadd.f32 0.0, %v675
    %v677 = vpop.f32.mrf.mxu0
    %678 = vmatprep.mubr.bf16.mxu0 0
    %679 = vmatmul.mubr.bf16.gmra.mxu0 %v216
    %v680 = vpop.f32.mrf.mxu0
    %v681 = vadd.f32 0.0, %v680
    %v682 = vpop.f32.mrf.mxu0
    %v683 = vpop.f32.mrf.mxu0
    %v684 = vadd.f32 0.0, %v683
    %v685 = vpop.f32.mrf.mxu0
    %686 = vmatprep.mubr.bf16.mxu0 0
    %687 = vmatmul.mubr.bf16.gmra.mxu0 %v219
    %v688 = vpop.f32.mrf.mxu0
    %v689 = vadd.f32 0.0, %v688
    %v690 = vpop.f32.mrf.mxu0
    %v691 = vpop.f32.mrf.mxu0
    %v692 = vadd.f32 0.0, %v691
    %v693 = vpop.f32.mrf.mxu0
    %694 = vmatprep.mubr.bf16.mxu0 0
    %695 = vmatmul.mubr.bf16.gmra.mxu0 %v222
    %v696 = vpop.f32.mrf.mxu0
    %v697 = vadd.f32 0.0, %v696
    %v698 = vpop.f32.mrf.mxu0
    %v699 = vpop.f32.mrf.mxu0
    %v700 = vadd.f32 0.0, %v699
    %v701 = vpop.f32.mrf.mxu0
    %702 = vmatprep.mubr.bf16.mxu0 0
    %703 = vmatmul.mubr.bf16.gmra.mxu0 %v225
    %v704 = vpop.f32.mrf.mxu0
    %v705 = vadd.f32 0.0, %v704
    %v706 = vpop.f32.mrf.mxu0
    %v707 = vpop.f32.mrf.mxu0
    %v708 = vadd.f32 0.0, %v707
    %v709 = vpop.f32.mrf.mxu0
    %710 = vmatprep.mubr.bf16.mxu0 0
    %711 = vmatmul.mubr.bf16.gmra.mxu0 %v228
    %v712 = vpop.f32.mrf.mxu0
    %v713 = vadd.f32 0.0, %v712
    %v714 = vpop.f32.mrf.mxu0
    %v715 = vpop.f32.mrf.mxu0
    %v716 = vadd.f32 0.0, %v715
    %v717 = vpop.f32.mrf.mxu0
    %718 = vmatprep.mubr.bf16.mxu0 0
    %719 = vmatmul.mubr.bf16.gmra.mxu0 %v231
    %v720 = vpop.f32.mrf.mxu0
    %v721 = vadd.f32 0.0, %v720
    %v722 = vpop.f32.mrf.mxu0
    %v723 = vpop.f32.mrf.mxu0
    %v724 = vadd.f32 0.0, %v723
    %v725 = vpop.f32.mrf.mxu0
    %726 = vmatprep.mubr.bf16.mxu0 0
    %727 = vmatmul.mubr.bf16.gmra.mxu0 %v234
    %v728 = vpop.f32.mrf.mxu0
    %v729 = vadd.f32 0.0, %v728
    %v730 = vpop.f32.mrf.mxu0
    %v731 = vpop.f32.mrf.mxu0
    %v732 = vadd.f32 0.0, %v731
    %v733 = vpop.f32.mrf.mxu0
    %734 = vmatprep.mubr.bf16.mxu0 0
    %735 = vmatmul.mubr.bf16.gmra.mxu0 %v237
    %v736 = vpop.f32.mrf.mxu0
    %v737 = vadd.f32 0.0, %v736
    %v738 = vpop.f32.mrf.mxu0
    %v739 = vpop.f32.mrf.mxu0
    %v740 = vadd.f32 0.0, %v739
    %v741 = vpop.f32.mrf.mxu0
    %742 = vmatprep.mubr.bf16.mxu0 0
    %743 = vmatmul.mubr.bf16.gmra.mxu0 %v240
    %v744 = vpop.f32.mrf.mxu0
    %v745 = vadd.f32 0.0, %v744
    %v746 = vpop.f32.mrf.mxu0
    %v747 = vpop.f32.mrf.mxu0
    %v748 = vadd.f32 0.0, %v747
    %v749 = vpop.f32.mrf.mxu0
    %750 = vmatprep.mubr.bf16.mxu0 0
    %751 = vmatmul.mubr.bf16.gmra.mxu0 %v243
    %v752 = vpop.f32.mrf.mxu0
    %v753 = vadd.f32 0.0, %v752
    %v754 = vpop.f32.mrf.mxu0
    %v755 = vpop.f32.mrf.mxu0
    %v756 = vpop.f32.mrf.mxu0
    %757 = vdwg.mxu0
    %v761 = vunpack.c.l.b16 %v176
    %v762 = vunpack.c.l.b16 %v177
    %v763 = vunpack.c.l.b16 %v178
    %v764 = vpack.c.b16 %v762, %v761
    %v765 = vpack.c.b16 %v763, %v763
    %v768 = vsel %vm245, %v765, 0
    %770 = vmatprep.subr.bf16.mxu0 0
    %771 = vmatpush1.bf16.msra.mxu0 0
    %772 = vmatprep.subr.bf16.mxu0 0
    %773 = vmatpush1.bf16.msra.mxu0 0
    %774 = vmatprep.subr.bf16.mxu0 0
    %775 = vmatpush1.bf16.msra.mxu0 0
    %776 = vmatprep.subr.bf16.mxu0 0
    %777 = vmatpush1.bf16.msra.mxu0 0
    %778 = vmatprep.subr.bf16.mxu0 0
    %779 = vmatpush1.bf16.msra.mxu0 0
    %780 = vmatprep.subr.bf16.mxu0 0
    %781 = vmatpush1.bf16.msra.mxu0 0
    %782 = vmatprep.subr.bf16.mxu0 0
    %783 = vmatpush1.bf16.msra.mxu0 %v768
    %784 = vmatprep.subr.bf16.mxu0 0
    %785 = vmatpush1.bf16.msra.mxu0 %v764
    %786 = vmatprep.subr.bf16.mxu0 0
    %787 = vmatpush2.bf16.msra.mxu0 0
    %788 = vmatprep.subr.bf16.mxu0 0
    %789 = vmatpush2.bf16.msra.mxu0 0
    %790 = vmatprep.subr.bf16.mxu0 0
    %791 = vmatpush2.bf16.msra.mxu0 0
    %792 = vmatprep.subr.bf16.mxu0 0
    %793 = vmatpush2.bf16.msra.mxu0 0
    %794 = vmatprep.subr.bf16.mxu0 0
    %795 = vmatpush2.bf16.msra.mxu0 0
    %796 = vmatprep.subr.bf16.mxu0 0
    %797 = vmatpush2.bf16.msra.mxu0 0
    %798 = vmatprep.subr.bf16.mxu0 0
    %799 = vmatpush2.bf16.msra.mxu0 0
    %800 = vmatprep.subr.bf16.mxu0 0
    %801 = vmatpush2.bf16.msra.mxu0 0
    %802 = vmatprep.mubr.bf16.mxu0 0
    %803 = vmatmul.mubr.bf16.gmra.mxu0 %v418
    %v804 = vpop.f32.mrf.mxu0
    %v805 = vadd.f32 %v633, %v804
    %v806 = vpop.f32.mrf.mxu0
    %v807 = vpop.f32.mrf.mxu0
    %v808 = vadd.f32 %v636, %v807
    %v809 = vpop.f32.mrf.mxu0
    %810 = vmatprep.mubr.bf16.mxu0 0
    %811 = vmatmul.mubr.bf16.gmra.mxu0 %v198
    %v812 = vpop.f32.mrf.mxu0
    %v813 = vadd.f32 %v641, %v812
    %v814 = vpop.f32.mrf.mxu0
    %v815 = vpop.f32.mrf.mxu0
    %v816 = vadd.f32 %v644, %v815
    %v817 = vpop.f32.mrf.mxu0
    %818 = vmatprep.mubr.bf16.mxu0 0
    %819 = vmatmul.mubr.bf16.gmra.mxu0 %v201
    %v820 = vpop.f32.mrf.mxu0
    %v821 = vadd.f32 %v649, %v820
    %v822 = vpop.f32.mrf.mxu0
    %v823 = vpop.f32.mrf.mxu0
    %v824 = vadd.f32 %v652, %v823
    %v825 = vpop.f32.mrf.mxu0
    %826 = vmatprep.mubr.bf16.mxu0 0
    %827 = vmatmul.mubr.bf16.gmra.mxu0 %v204
    %v828 = vpop.f32.mrf.mxu0
    %v829 = vadd.f32 %v657, %v828
    %v830 = vpop.f32.mrf.mxu0
    %v831 = vpop.f32.mrf.mxu0
    %v832 = vadd.f32 %v660, %v831
    %v833 = vpop.f32.mrf.mxu0
    %834 = vmatprep.mubr.bf16.mxu0 0
    %835 = vmatmul.mubr.bf16.gmra.mxu0 %v207
    %v836 = vpop.f32.mrf.mxu0
    %v837 = vadd.f32 %v665, %v836
    %v838 = vpop.f32.mrf.mxu0
    %v839 = vpop.f32.mrf.mxu0
    %v840 = vadd.f32 %v668, %v839
    %v841 = vpop.f32.mrf.mxu0
    %842 = vmatprep.mubr.bf16.mxu0 0
    %843 = vmatmul.mubr.bf16.gmra.mxu0 %v210
    %v844 = vpop.f32.mrf.mxu0
    %v845 = vadd.f32 %v673, %v844
    %v846 = vpop.f32.mrf.mxu0
    %v847 = vpop.f32.mrf.mxu0
    %v848 = vadd.f32 %v676, %v847
    %v849 = vpop.f32.mrf.mxu0
    %850 = vmatprep.mubr.bf16.mxu0 0
    %851 = vmatmul.mubr.bf16.gmra.mxu0 %v213
    %v852 = vpop.f32.mrf.mxu0
    %v853 = vadd.f32 %v681, %v852
    %v854 = vpop.f32.mrf.mxu0
    %v855 = vpop.f32.mrf.mxu0
    %v856 = vadd.f32 %v684, %v855
    %v857 = vpop.f32.mrf.mxu0
    %858 = vmatprep.mubr.bf16.mxu0 0
    %859 = vmatmul.mubr.bf16.gmra.mxu0 %v216
    %v860 = vpop.f32.mrf.mxu0
    %v861 = vadd.f32 %v689, %v860
    %v862 = vpop.f32.mrf.mxu0
    %v863 = vpop.f32.mrf.mxu0
    %v864 = vadd.f32 %v692, %v863
    %v865 = vpop.f32.mrf.mxu0
    %866 = vmatprep.mubr.bf16.mxu0 0
    %867 = vmatmul.mubr.bf16.gmra.mxu0 %v219
    %v868 = vpop.f32.mrf.mxu0
    %v869 = vadd.f32 %v697, %v868
    %v870 = vpop.f32.mrf.mxu0
    %v871 = vpop.f32.mrf.mxu0
    %v872 = vadd.f32 %v700, %v871
    %v873 = vpop.f32.mrf.mxu0
    %874 = vmatprep.mubr.bf16.mxu0 0
    %875 = vmatmul.mubr.bf16.gmra.mxu0 %v222
    %v876 = vpop.f32.mrf.mxu0
    %v877 = vadd.f32 %v705, %v876
    %v878 = vpop.f32.mrf.mxu0
    %v879 = vpop.f32.mrf.mxu0
    %v880 = vadd.f32 %v708, %v879
    %v881 = vpop.f32.mrf.mxu0
    %882 = vmatprep.mubr.bf16.mxu0 0
    %883 = vmatmul.mubr.bf16.gmra.mxu0 %v225
    %v884 = vpop.f32.mrf.mxu0
    %v885 = vadd.f32 %v713, %v884
    %v886 = vpop.f32.mrf.mxu0
    %v887 = vpop.f32.mrf.mxu0
    %v888 = vadd.f32 %v716, %v887
    %v889 = vpop.f32.mrf.mxu0
    %890 = vmatprep.mubr.bf16.mxu0 0
    %891 = vmatmul.mubr.bf16.gmra.mxu0 %v228
    %v892 = vpop.f32.mrf.mxu0
    %v893 = vadd.f32 %v721, %v892
    %v894 = vpop.f32.mrf.mxu0
    %v895 = vpop.f32.mrf.mxu0
    %v896 = vadd.f32 %v724, %v895
    %v897 = vpop.f32.mrf.mxu0
    %898 = vmatprep.mubr.bf16.mxu0 0
    %899 = vmatmul.mubr.bf16.gmra.mxu0 %v231
    %v900 = vpop.f32.mrf.mxu0
    %v901 = vadd.f32 %v729, %v900
    %v902 = vpop.f32.mrf.mxu0
    %v903 = vpop.f32.mrf.mxu0
    %v904 = vadd.f32 %v732, %v903
    %v905 = vpop.f32.mrf.mxu0
    %906 = vmatprep.mubr.bf16.mxu0 0
    %907 = vmatmul.mubr.bf16.gmra.mxu0 %v234
    %v908 = vpop.f32.mrf.mxu0
    %v909 = vadd.f32 %v737, %v908
    %v910 = vpop.f32.mrf.mxu0
    %v911 = vpop.f32.mrf.mxu0
    %v912 = vadd.f32 %v740, %v911
    %v913 = vpop.f32.mrf.mxu0
    %914 = vmatprep.mubr.bf16.mxu0 0
    %915 = vmatmul.mubr.bf16.gmra.mxu0 %v237
    %v916 = vpop.f32.mrf.mxu0
    %v917 = vadd.f32 %v745, %v916
    %v918 = vpop.f32.mrf.mxu0
    %v919 = vpop.f32.mrf.mxu0
    %v920 = vadd.f32 %v748, %v919
    %v921 = vpop.f32.mrf.mxu0
    %922 = vmatprep.mubr.bf16.mxu0 0
    %923 = vmatmul.mubr.bf16.gmra.mxu0 %v240
    %v924 = vpop.f32.mrf.mxu0
    %v925 = vadd.f32 %v753, %v924
    %v926 = vpop.f32.mrf.mxu0
    %v927 = vpop.f32.mrf.mxu0
    %v928 = vpop.f32.mrf.mxu0
    %929 = vdwg.mxu0
    %s930 = scalar_lea.vmem %s2, 60
    %v931 = vld [vmem:[%s930] sm:$0xf]
    %v932 = vld [vmem:[%s930 + $0x4] sm:$0xf]
    %v933 = vld [vmem:[%s930 + $0x8] sm:$0xf]
    %v937 = vunpack.c.l.b16 %v931
    %v938 = vunpack.c.l.b16 %v932
    %v939 = vunpack.c.l.b16 %v933
    %v940 = vpack.c.b16 %v938, %v937
    %v941 = vpack.c.b16 %v939, %v939
    %v944 = vsel %vm245, %v941, 0
    %946 = vmatprep.subr.bf16.mxu0 0
    %947 = vmatpush1.bf16.msra.mxu0 0
    %948 = vmatprep.subr.bf16.mxu0 0
    %949 = vmatpush1.bf16.msra.mxu0 0
    %950 = vmatprep.subr.bf16.mxu0 0
    %951 = vmatpush1.bf16.msra.mxu0 0
    %952 = vmatprep.subr.bf16.mxu0 0
    %953 = vmatpush1.bf16.msra.mxu0 0
    %954 = vmatprep.subr.bf16.mxu0 0
    %955 = vmatpush1.bf16.msra.mxu0 0
    %956 = vmatprep.subr.bf16.mxu0 0
    %957 = vmatpush1.bf16.msra.mxu0 0
    %958 = vmatprep.subr.bf16.mxu0 0
    %959 = vmatpush1.bf16.msra.mxu0 %v944
    %960 = vmatprep.subr.bf16.mxu0 0
    %961 = vmatpush1.bf16.msra.mxu0 %v940
    %962 = vmatprep.subr.bf16.mxu0 0
    %963 = vmatpush2.bf16.msra.mxu0 0
    %964 = vmatprep.subr.bf16.mxu0 0
    %965 = vmatpush2.bf16.msra.mxu0 0
    %966 = vmatprep.subr.bf16.mxu0 0
    %967 = vmatpush2.bf16.msra.mxu0 0
    %968 = vmatprep.subr.bf16.mxu0 0
    %969 = vmatpush2.bf16.msra.mxu0 0
    %970 = vmatprep.subr.bf16.mxu0 0
    %971 = vmatpush2.bf16.msra.mxu0 0
    %972 = vmatprep.subr.bf16.mxu0 0
    %973 = vmatpush2.bf16.msra.mxu0 0
    %974 = vmatprep.subr.bf16.mxu0 0
    %975 = vmatpush2.bf16.msra.mxu0 0
    %976 = vmatprep.subr.bf16.mxu0 0
    %977 = vmatpush2.bf16.msra.mxu0 0
    %978 = vmatprep.mubr.bf16.mxu0 0
    %979 = vmatmul.mubr.bf16.gmra.mxu0 %v198
    %v980 = vpop.f32.mrf.mxu0
    %v981 = vadd.f32 0.0, %v980
    %v982 = vpop.f32.mrf.mxu0
    %v983 = vpop.f32.mrf.mxu0
    %v984 = vadd.f32 0.0, %v983
    %v985 = vpop.f32.mrf.mxu0
    %986 = vmatprep.mubr.bf16.mxu0 0
    %987 = vmatmul.mubr.bf16.gmra.mxu0 %v201
    %v988 = vpop.f32.mrf.mxu0
    %v989 = vadd.f32 0.0, %v988
    %v990 = vpop.f32.mrf.mxu0
    %v991 = vpop.f32.mrf.mxu0
    %v992 = vadd.f32 0.0, %v991
    %v993 = vpop.f32.mrf.mxu0
    %994 = vmatprep.mubr.bf16.mxu0 0
    %995 = vmatmul.mubr.bf16.gmra.mxu0 %v204
    %v996 = vpop.f32.mrf.mxu0
    %v997 = vadd.f32 0.0, %v996
    %v998 = vpop.f32.mrf.mxu0
    %v999 = vpop.f32.mrf.mxu0
    %v1000 = vadd.f32 0.0, %v999
    %v1001 = vpop.f32.mrf.mxu0
    %1002 = vmatprep.mubr.bf16.mxu0 0
    %1003 = vmatmul.mubr.bf16.gmra.mxu0 %v207
    %v1004 = vpop.f32.mrf.mxu0
    %v1005 = vadd.f32 0.0, %v1004
    %v1006 = vpop.f32.mrf.mxu0
    %v1007 = vpop.f32.mrf.mxu0
    %v1008 = vadd.f32 0.0, %v1007
    %v1009 = vpop.f32.mrf.mxu0
    %1010 = vmatprep.mubr.bf16.mxu0 0
    %1011 = vmatmul.mubr.bf16.gmra.mxu0 %v210
    %v1012 = vpop.f32.mrf.mxu0
    %v1013 = vadd.f32 0.0, %v1012
    %v1014 = vpop.f32.mrf.mxu0
    %v1015 = vpop.f32.mrf.mxu0
    %v1016 = vadd.f32 0.0, %v1015
    %v1017 = vpop.f32.mrf.mxu0
    %1018 = vmatprep.mubr.bf16.mxu0 0
    %1019 = vmatmul.mubr.bf16.gmra.mxu0 %v213
    %v1020 = vpop.f32.mrf.mxu0
    %v1021 = vadd.f32 0.0, %v1020
    %v1022 = vpop.f32.mrf.mxu0
    %v1023 = vpop.f32.mrf.mxu0
    %v1024 = vadd.f32 0.0, %v1023
    %v1025 = vpop.f32.mrf.mxu0
    %1026 = vmatprep.mubr.bf16.mxu0 0
    %1027 = vmatmul.mubr.bf16.gmra.mxu0 %v216
    %v1028 = vpop.f32.mrf.mxu0
    %v1029 = vadd.f32 0.0, %v1028
    %v1030 = vpop.f32.mrf.mxu0
    %v1031 = vpop.f32.mrf.mxu0
    %v1032 = vadd.f32 0.0, %v1031
    %v1033 = vpop.f32.mrf.mxu0
    %1034 = vmatprep.mubr.bf16.mxu0 0
    %1035 = vmatmul.mubr.bf16.gmra.mxu0 %v219
    %v1036 = vpop.f32.mrf.mxu0
    %v1037 = vadd.f32 0.0, %v1036
    %v1038 = vpop.f32.mrf.mxu0
    %v1039 = vpop.f32.mrf.mxu0
    %v1040 = vadd.f32 0.0, %v1039
    %v1041 = vpop.f32.mrf.mxu0
    %1042 = vmatprep.mubr.bf16.mxu0 0
    %1043 = vmatmul.mubr.bf16.gmra.mxu0 %v222
    %v1044 = vpop.f32.mrf.mxu0
    %v1045 = vadd.f32 0.0, %v1044
    %v1046 = vpop.f32.mrf.mxu0
    %v1047 = vpop.f32.mrf.mxu0
    %v1048 = vadd.f32 0.0, %v1047
    %v1049 = vpop.f32.mrf.mxu0
    %1050 = vmatprep.mubr.bf16.mxu0 0
    %1051 = vmatmul.mubr.bf16.gmra.mxu0 %v225
    %v1052 = vpop.f32.mrf.mxu0
    %v1053 = vadd.f32 0.0, %v1052
    %v1054 = vpop.f32.mrf.mxu0
    %v1055 = vpop.f32.mrf.mxu0
    %v1056 = vadd.f32 0.0, %v1055
    %v1057 = vpop.f32.mrf.mxu0
    %1058 = vmatprep.mubr.bf16.mxu0 0
    %1059 = vmatmul.mubr.bf16.gmra.mxu0 %v228
    %v1060 = vpop.f32.mrf.mxu0
    %v1061 = vadd.f32 0.0, %v1060
    %v1062 = vpop.f32.mrf.mxu0
    %v1063 = vpop.f32.mrf.mxu0
    %v1064 = vadd.f32 0.0, %v1063
    %v1065 = vpop.f32.mrf.mxu0
    %1066 = vmatprep.mubr.bf16.mxu0 0
    %1067 = vmatmul.mubr.bf16.gmra.mxu0 %v231
    %v1068 = vpop.f32.mrf.mxu0
    %v1069 = vadd.f32 0.0, %v1068
    %v1070 = vpop.f32.mrf.mxu0
    %v1071 = vpop.f32.mrf.mxu0
    %v1072 = vadd.f32 0.0, %v1071
    %v1073 = vpop.f32.mrf.mxu0
    %1074 = vmatprep.mubr.bf16.mxu0 0
    %1075 = vmatmul.mubr.bf16.gmra.mxu0 %v234
    %v1076 = vpop.f32.mrf.mxu0
    %v1077 = vadd.f32 0.0, %v1076
    %v1078 = vpop.f32.mrf.mxu0
    %v1079 = vpop.f32.mrf.mxu0
    %v1080 = vadd.f32 0.0, %v1079
    %v1081 = vpop.f32.mrf.mxu0
    %1082 = vmatprep.mubr.bf16.mxu0 0
    %1083 = vmatmul.mubr.bf16.gmra.mxu0 %v237
    %v1084 = vpop.f32.mrf.mxu0
    %v1085 = vadd.f32 0.0, %v1084
    %v1086 = vpop.f32.mrf.mxu0
    %v1087 = vpop.f32.mrf.mxu0
    %v1088 = vadd.f32 0.0, %v1087
    %v1089 = vpop.f32.mrf.mxu0
    %1090 = vmatprep.mubr.bf16.mxu0 0
    %1091 = vmatmul.mubr.bf16.gmra.mxu0 %v240
    %v1092 = vpop.f32.mrf.mxu0
    %v1093 = vadd.f32 0.0, %v1092
    %v1094 = vpop.f32.mrf.mxu0
    %v1095 = vpop.f32.mrf.mxu0
    %v1096 = vadd.f32 0.0, %v1095
    %v1097 = vpop.f32.mrf.mxu0
    %1098 = vmatprep.mubr.bf16.mxu0 0
    %1099 = vmatmul.mubr.bf16.gmra.mxu0 %v243
    %v1100 = vpop.f32.mrf.mxu0
    %v1101 = vadd.f32 0.0, %v1100
    %v1102 = vpop.f32.mrf.mxu0
    %v1103 = vpop.f32.mrf.mxu0
    %v1104 = vpop.f32.mrf.mxu0
    %1105 = vdwg.mxu0
    %v1109 = vunpack.c.l.b16 %v180
    %v1110 = vunpack.c.l.b16 %v181
    %v1111 = vunpack.c.l.b16 %v182
    %v1112 = vpack.c.b16 %v1110, %v1109
    %v1113 = vpack.c.b16 %v1111, %v1111
    %v1116 = vsel %vm245, %v1113, 0
    %1118 = vmatprep.subr.bf16.mxu0 0
    %1119 = vmatpush1.bf16.msra.mxu0 0
    %1120 = vmatprep.subr.bf16.mxu0 0
    %1121 = vmatpush1.bf16.msra.mxu0 0
    %1122 = vmatprep.subr.bf16.mxu0 0
    %1123 = vmatpush1.bf16.msra.mxu0 0
    %1124 = vmatprep.subr.bf16.mxu0 0
    %1125 = vmatpush1.bf16.msra.mxu0 0
    %1126 = vmatprep.subr.bf16.mxu0 0
    %1127 = vmatpush1.bf16.msra.mxu0 0
    %1128 = vmatprep.subr.bf16.mxu0 0
    %1129 = vmatpush1.bf16.msra.mxu0 0
    %1130 = vmatprep.subr.bf16.mxu0 0
    %1131 = vmatpush1.bf16.msra.mxu0 %v1116
    %1132 = vmatprep.subr.bf16.mxu0 0
    %1133 = vmatpush1.bf16.msra.mxu0 %v1112
    %1134 = vmatprep.subr.bf16.mxu0 0
    %1135 = vmatpush2.bf16.msra.mxu0 0
    %1136 = vmatprep.subr.bf16.mxu0 0
    %1137 = vmatpush2.bf16.msra.mxu0 0
    %1138 = vmatprep.subr.bf16.mxu0 0
    %1139 = vmatpush2.bf16.msra.mxu0 0
    %1140 = vmatprep.subr.bf16.mxu0 0
    %1141 = vmatpush2.bf16.msra.mxu0 0
    %1142 = vmatprep.subr.bf16.mxu0 0
    %1143 = vmatpush2.bf16.msra.mxu0 0
    %1144 = vmatprep.subr.bf16.mxu0 0
    %1145 = vmatpush2.bf16.msra.mxu0 0
    %1146 = vmatprep.subr.bf16.mxu0 0
    %1147 = vmatpush2.bf16.msra.mxu0 0
    %1148 = vmatprep.subr.bf16.mxu0 0
    %1149 = vmatpush2.bf16.msra.mxu0 0
    %1150 = vmatprep.mubr.bf16.mxu0 0
    %1151 = vmatmul.mubr.bf16.gmra.mxu0 %v418
    %v1152 = vpop.f32.mrf.mxu0
    %v1153 = vadd.f32 %v981, %v1152
    %v1154 = vpop.f32.mrf.mxu0
    %v1155 = vpop.f32.mrf.mxu0
    %v1156 = vadd.f32 %v984, %v1155
    %v1157 = vpop.f32.mrf.mxu0
    %1158 = vmatprep.mubr.bf16.mxu0 0
    %1159 = vmatmul.mubr.bf16.gmra.mxu0 %v198
    %v1160 = vpop.f32.mrf.mxu0
    %v1161 = vadd.f32 %v989, %v1160
    %v1162 = vpop.f32.mrf.mxu0
    %v1163 = vpop.f32.mrf.mxu0
    %v1164 = vadd.f32 %v992, %v1163
    %v1165 = vpop.f32.mrf.mxu0
    %1166 = vmatprep.mubr.bf16.mxu0 0
    %1167 = vmatmul.mubr.bf16.gmra.mxu0 %v201
    %v1168 = vpop.f32.mrf.mxu0
    %v1169 = vadd.f32 %v997, %v1168
    %v1170 = vpop.f32.mrf.mxu0
    %v1171 = vpop.f32.mrf.mxu0
    %v1172 = vadd.f32 %v1000, %v1171
    %v1173 = vpop.f32.mrf.mxu0
    %1174 = vmatprep.mubr.bf16.mxu0 0
    %1175 = vmatmul.mubr.bf16.gmra.mxu0 %v204
    %v1176 = vpop.f32.mrf.mxu0
    %v1177 = vadd.f32 %v1005, %v1176
    %v1178 = vpop.f32.mrf.mxu0
    %v1179 = vpop.f32.mrf.mxu0
    %v1180 = vadd.f32 %v1008, %v1179
    %v1181 = vpop.f32.mrf.mxu0
    %1182 = vmatprep.mubr.bf16.mxu0 0
    %1183 = vmatmul.mubr.bf16.gmra.mxu0 %v207
    %v1184 = vpop.f32.mrf.mxu0
    %v1185 = vadd.f32 %v1013, %v1184
    %v1186 = vpop.f32.mrf.mxu0
    %v1187 = vpop.f32.mrf.mxu0
    %v1188 = vadd.f32 %v1016, %v1187
    %v1189 = vpop.f32.mrf.mxu0
    %1190 = vmatprep.mubr.bf16.mxu0 0
    %1191 = vmatmul.mubr.bf16.gmra.mxu0 %v210
    %v1192 = vpop.f32.mrf.mxu0
    %v1193 = vadd.f32 %v1021, %v1192
    %v1194 = vpop.f32.mrf.mxu0
    %v1195 = vpop.f32.mrf.mxu0
    %v1196 = vadd.f32 %v1024, %v1195
    %v1197 = vpop.f32.mrf.mxu0
    %1198 = vmatprep.mubr.bf16.mxu0 0
    %1199 = vmatmul.mubr.bf16.gmra.mxu0 %v213
    %v1200 = vpop.f32.mrf.mxu0
    %v1201 = vadd.f32 %v1029, %v1200
    %v1202 = vpop.f32.mrf.mxu0
    %v1203 = vpop.f32.mrf.mxu0
    %v1204 = vadd.f32 %v1032, %v1203
    %v1205 = vpop.f32.mrf.mxu0
    %1206 = vmatprep.mubr.bf16.mxu0 0
    %1207 = vmatmul.mubr.bf16.gmra.mxu0 %v216
    %v1208 = vpop.f32.mrf.mxu0
    %v1209 = vadd.f32 %v1037, %v1208
    %v1210 = vpop.f32.mrf.mxu0
    %v1211 = vpop.f32.mrf.mxu0
    %v1212 = vadd.f32 %v1040, %v1211
    %v1213 = vpop.f32.mrf.mxu0
    %1214 = vmatprep.mubr.bf16.mxu0 0
    %1215 = vmatmul.mubr.bf16.gmra.mxu0 %v219
    %v1216 = vpop.f32.mrf.mxu0
    %v1217 = vadd.f32 %v1045, %v1216
    %v1218 = vpop.f32.mrf.mxu0
    %v1219 = vpop.f32.mrf.mxu0
    %v1220 = vadd.f32 %v1048, %v1219
    %v1221 = vpop.f32.mrf.mxu0
    %1222 = vmatprep.mubr.bf16.mxu0 0
    %1223 = vmatmul.mubr.bf16.gmra.mxu0 %v222
    %v1224 = vpop.f32.mrf.mxu0
    %v1225 = vadd.f32 %v1053, %v1224
    %v1226 = vpop.f32.mrf.mxu0
    %v1227 = vpop.f32.mrf.mxu0
    %v1228 = vadd.f32 %v1056, %v1227
    %v1229 = vpop.f32.mrf.mxu0
    %1230 = vmatprep.mubr.bf16.mxu0 0
    %1231 = vmatmul.mubr.bf16.gmra.mxu0 %v225
    %v1232 = vpop.f32.mrf.mxu0
    %v1233 = vadd.f32 %v1061, %v1232
    %v1234 = vpop.f32.mrf.mxu0
    %v1235 = vpop.f32.mrf.mxu0
    %v1236 = vadd.f32 %v1064, %v1235
    %v1237 = vpop.f32.mrf.mxu0
    %1238 = vmatprep.mubr.bf16.mxu0 0
    %1239 = vmatmul.mubr.bf16.gmra.mxu0 %v228
    %v1240 = vpop.f32.mrf.mxu0
    %v1241 = vadd.f32 %v1069, %v1240
    %v1242 = vpop.f32.mrf.mxu0
    %v1243 = vpop.f32.mrf.mxu0
    %v1244 = vadd.f32 %v1072, %v1243
    %v1245 = vpop.f32.mrf.mxu0
    %1246 = vmatprep.mubr.bf16.mxu0 0
    %1247 = vmatmul.mubr.bf16.gmra.mxu0 %v231
    %v1248 = vpop.f32.mrf.mxu0
    %v1249 = vadd.f32 %v1077, %v1248
    %v1250 = vpop.f32.mrf.mxu0
    %v1251 = vpop.f32.mrf.mxu0
    %v1252 = vadd.f32 %v1080, %v1251
    %v1253 = vpop.f32.mrf.mxu0
    %1254 = vmatprep.mubr.bf16.mxu0 0
    %1255 = vmatmul.mubr.bf16.gmra.mxu0 %v234
    %v1256 = vpop.f32.mrf.mxu0
    %v1257 = vadd.f32 %v1085, %v1256
    %v1258 = vpop.f32.mrf.mxu0
    %v1259 = vpop.f32.mrf.mxu0
    %v1260 = vadd.f32 %v1088, %v1259
    %v1261 = vpop.f32.mrf.mxu0
    %1262 = vmatprep.mubr.bf16.mxu0 0
    %1263 = vmatmul.mubr.bf16.gmra.mxu0 %v237
    %v1264 = vpop.f32.mrf.mxu0
    %v1265 = vadd.f32 %v1093, %v1264
    %v1266 = vpop.f32.mrf.mxu0
    %v1267 = vpop.f32.mrf.mxu0
    %v1268 = vadd.f32 %v1096, %v1267
    %v1269 = vpop.f32.mrf.mxu0
    %1270 = vmatprep.mubr.bf16.mxu0 0
    %1271 = vmatmul.mubr.bf16.gmra.mxu0 %v240
    %v1272 = vpop.f32.mrf.mxu0
    %v1273 = vadd.f32 %v1101, %v1272
    %v1274 = vpop.f32.mrf.mxu0
    %v1275 = vpop.f32.mrf.mxu0
    %v1276 = vpop.f32.mrf.mxu0
    %1277 = vdwg.mxu0
    %s1278 = scalar_lea.vmem %s2, 72
    %v1279 = vld [vmem:[%s1278] sm:$0xf]
    %v1280 = vld [vmem:[%s1278 + $0x4] sm:$0xf]
    %v1281 = vld [vmem:[%s1278 + $0x8] sm:$0xf]
    %v1285 = vunpack.c.l.b16 %v1279
    %v1286 = vunpack.c.l.b16 %v1280
    %v1287 = vunpack.c.l.b16 %v1281
    %v1288 = vpack.c.b16 %v1286, %v1285
    %v1289 = vpack.c.b16 %v1287, %v1287
    %v1292 = vsel %vm196, %v171, 0
    %v1295 = vsel %vm245, %v1289, 0
    %1297 = vmatprep.subr.bf16.mxu0 0
    %1298 = vmatpush1.bf16.msra.mxu0 0
    %1299 = vmatprep.subr.bf16.mxu0 0
    %1300 = vmatpush1.bf16.msra.mxu0 0
    %1301 = vmatprep.subr.bf16.mxu0 0
    %1302 = vmatpush1.bf16.msra.mxu0 0
    %1303 = vmatprep.subr.bf16.mxu0 0
    %1304 = vmatpush1.bf16.msra.mxu0 0
    %1305 = vmatprep.subr.bf16.mxu0 0
    %1306 = vmatpush1.bf16.msra.mxu0 0
    %1307 = vmatprep.subr.bf16.mxu0 0
    %1308 = vmatpush1.bf16.msra.mxu0 0
    %1309 = vmatprep.subr.bf16.mxu0 0
    %1310 = vmatpush1.bf16.msra.mxu0 %v1295
    %1311 = vmatprep.subr.bf16.mxu0 0
    %1312 = vmatpush1.bf16.msra.mxu0 %v1288
    %1313 = vmatprep.subr.bf16.mxu0 0
    %1314 = vmatpush2.bf16.msra.mxu0 0
    %1315 = vmatprep.subr.bf16.mxu0 0
    %1316 = vmatpush2.bf16.msra.mxu0 0
    %1317 = vmatprep.subr.bf16.mxu0 0
    %1318 = vmatpush2.bf16.msra.mxu0 0
    %1319 = vmatprep.subr.bf16.mxu0 0
    %1320 = vmatpush2.bf16.msra.mxu0 0
    %1321 = vmatprep.subr.bf16.mxu0 0
    %1322 = vmatpush2.bf16.msra.mxu0 0
    %1323 = vmatprep.subr.bf16.mxu0 0
    %1324 = vmatpush2.bf16.msra.mxu0 0
    %1325 = vmatprep.subr.bf16.mxu0 0
    %1326 = vmatpush2.bf16.msra.mxu0 0
    %1327 = vmatprep.subr.bf16.mxu0 0
    %1328 = vmatpush2.bf16.msra.mxu0 0
    %1329 = vmatprep.mubr.bf16.mxu0 0
    %1330 = vmatmul.mubr.bf16.gmra.mxu0 %v201
    %v1331 = vpop.f32.mrf.mxu0
    %v1332 = vadd.f32 0.0, %v1331
    %v1333 = vpop.f32.mrf.mxu0
    %v1334 = vpop.f32.mrf.mxu0
    %v1335 = vadd.f32 0.0, %v1334
    %v1336 = vpop.f32.mrf.mxu0
    %1337 = vmatprep.mubr.bf16.mxu0 0
    %1338 = vmatmul.mubr.bf16.gmra.mxu0 %v204
    %v1339 = vpop.f32.mrf.mxu0
    %v1340 = vadd.f32 0.0, %v1339
    %v1341 = vpop.f32.mrf.mxu0
    %v1342 = vpop.f32.mrf.mxu0
    %v1343 = vadd.f32 0.0, %v1342
    %v1344 = vpop.f32.mrf.mxu0
    %1345 = vmatprep.mubr.bf16.mxu0 0
    %1346 = vmatmul.mubr.bf16.gmra.mxu0 %v207
    %v1347 = vpop.f32.mrf.mxu0
    %v1348 = vadd.f32 0.0, %v1347
    %v1349 = vpop.f32.mrf.mxu0
    %v1350 = vpop.f32.mrf.mxu0
    %v1351 = vadd.f32 0.0, %v1350
    %v1352 = vpop.f32.mrf.mxu0
    %1353 = vmatprep.mubr.bf16.mxu0 0
    %1354 = vmatmul.mubr.bf16.gmra.mxu0 %v210
    %v1355 = vpop.f32.mrf.mxu0
    %v1356 = vadd.f32 0.0, %v1355
    %v1357 = vpop.f32.mrf.mxu0
    %v1358 = vpop.f32.mrf.mxu0
    %v1359 = vadd.f32 0.0, %v1358
    %v1360 = vpop.f32.mrf.mxu0
    %1361 = vmatprep.mubr.bf16.mxu0 0
    %1362 = vmatmul.mubr.bf16.gmra.mxu0 %v213
    %v1363 = vpop.f32.mrf.mxu0
    %v1364 = vadd.f32 0.0, %v1363
    %v1365 = vpop.f32.mrf.mxu0
    %v1366 = vpop.f32.mrf.mxu0
    %v1367 = vadd.f32 0.0, %v1366
    %v1368 = vpop.f32.mrf.mxu0
    %1369 = vmatprep.mubr.bf16.mxu0 0
    %1370 = vmatmul.mubr.bf16.gmra.mxu0 %v216
    %v1371 = vpop.f32.mrf.mxu0
    %v1372 = vadd.f32 0.0, %v1371
    %v1373 = vpop.f32.mrf.mxu0
    %v1374 = vpop.f32.mrf.mxu0
    %v1375 = vadd.f32 0.0, %v1374
    %v1376 = vpop.f32.mrf.mxu0
    %1377 = vmatprep.mubr.bf16.mxu0 0
    %1378 = vmatmul.mubr.bf16.gmra.mxu0 %v219
    %v1379 = vpop.f32.mrf.mxu0
    %v1380 = vadd.f32 0.0, %v1379
    %v1381 = vpop.f32.mrf.mxu0
    %v1382 = vpop.f32.mrf.mxu0
    %v1383 = vadd.f32 0.0, %v1382
    %v1384 = vpop.f32.mrf.mxu0
    %1385 = vmatprep.mubr.bf16.mxu0 0
    %1386 = vmatmul.mubr.bf16.gmra.mxu0 %v222
    %v1387 = vpop.f32.mrf.mxu0
    %v1388 = vadd.f32 0.0, %v1387
    %v1389 = vpop.f32.mrf.mxu0
    %v1390 = vpop.f32.mrf.mxu0
    %v1391 = vadd.f32 0.0, %v1390
    %v1392 = vpop.f32.mrf.mxu0
    %1393 = vmatprep.mubr.bf16.mxu0 0
    %1394 = vmatmul.mubr.bf16.gmra.mxu0 %v225
    %v1395 = vpop.f32.mrf.mxu0
    %v1396 = vadd.f32 0.0, %v1395
    %v1397 = vpop.f32.mrf.mxu0
    %v1398 = vpop.f32.mrf.mxu0
    %v1399 = vadd.f32 0.0, %v1398
    %v1400 = vpop.f32.mrf.mxu0
    %1401 = vmatprep.mubr.bf16.mxu0 0
    %1402 = vmatmul.mubr.bf16.gmra.mxu0 %v228
    %v1403 = vpop.f32.mrf.mxu0
    %v1404 = vadd.f32 0.0, %v1403
    %v1405 = vpop.f32.mrf.mxu0
    %v1406 = vpop.f32.mrf.mxu0
    %v1407 = vadd.f32 0.0, %v1406
    %v1408 = vpop.f32.mrf.mxu0
    %1409 = vmatprep.mubr.bf16.mxu0 0
    %1410 = vmatmul.mubr.bf16.gmra.mxu0 %v231
    %v1411 = vpop.f32.mrf.mxu0
    %v1412 = vadd.f32 0.0, %v1411
    %v1413 = vpop.f32.mrf.mxu0
    %v1414 = vpop.f32.mrf.mxu0
    %v1415 = vadd.f32 0.0, %v1414
    %v1416 = vpop.f32.mrf.mxu0
    %1417 = vmatprep.mubr.bf16.mxu0 0
    %1418 = vmatmul.mubr.bf16.gmra.mxu0 %v234
    %v1419 = vpop.f32.mrf.mxu0
    %v1420 = vadd.f32 0.0, %v1419
    %v1421 = vpop.f32.mrf.mxu0
    %v1422 = vpop.f32.mrf.mxu0
    %v1423 = vadd.f32 0.0, %v1422
    %v1424 = vpop.f32.mrf.mxu0
    %1425 = vmatprep.mubr.bf16.mxu0 0
    %1426 = vmatmul.mubr.bf16.gmra.mxu0 %v237
    %v1427 = vpop.f32.mrf.mxu0
    %v1428 = vadd.f32 0.0, %v1427
    %v1429 = vpop.f32.mrf.mxu0
    %v1430 = vpop.f32.mrf.mxu0
    %v1431 = vadd.f32 0.0, %v1430
    %v1432 = vpop.f32.mrf.mxu0
    %1433 = vmatprep.mubr.bf16.mxu0 0
    %1434 = vmatmul.mubr.bf16.gmra.mxu0 %v240
    %v1435 = vpop.f32.mrf.mxu0
    %v1436 = vadd.f32 0.0, %v1435
    %v1437 = vpop.f32.mrf.mxu0
    %v1438 = vpop.f32.mrf.mxu0
    %v1439 = vadd.f32 0.0, %v1438
    %v1440 = vpop.f32.mrf.mxu0
    %1441 = vmatprep.mubr.bf16.mxu0 0
    %1442 = vmatmul.mubr.bf16.gmra.mxu0 %v243
    %v1443 = vpop.f32.mrf.mxu0
    %v1444 = vadd.f32 0.0, %v1443
    %v1445 = vpop.f32.mrf.mxu0
    %v1446 = vpop.f32.mrf.mxu0
    %v1447 = vadd.f32 0.0, %v1446
    %v1448 = vpop.f32.mrf.mxu0
    %1449 = vmatprep.mubr.bf16.mxu0 0
    %1450 = vmatmul.mubr.bf16.gmra.mxu0 %v1292
    %v1451 = vpop.f32.mrf.mxu0
    %v1452 = vpop.f32.mrf.mxu0
    %v1453 = vpop.f32.mrf.mxu0
    %v1454 = vpop.f32.mrf.mxu0
    %1455 = vdwg.mxu0
    %v1456 = vadd.f32 %v458, %v1332
    %v1457 = vadd.f32 %v461, %v1335
    %v1458 = vadd.f32 %v466, %v1340
    %v1459 = vadd.f32 %v469, %v1343
    %v1460 = vadd.f32 %v474, %v1348
    %v1461 = vadd.f32 %v477, %v1351
    %v1462 = vadd.f32 %v482, %v1356
    %v1463 = vadd.f32 %v485, %v1359
    %v1464 = vadd.f32 %v490, %v1364
    %v1465 = vadd.f32 %v493, %v1367
    %v1466 = vadd.f32 %v498, %v1372
    %v1467 = vadd.f32 %v501, %v1375
    %v1468 = vadd.f32 %v506, %v1380
    %v1469 = vadd.f32 %v509, %v1383
    %v1470 = vadd.f32 %v514, %v1388
    %v1471 = vadd.f32 %v517, %v1391
    %v1472 = vadd.f32 %v522, %v1396
    %v1473 = vadd.f32 %v525, %v1399
    %v1474 = vadd.f32 %v530, %v1404
    %v1475 = vadd.f32 %v533, %v1407
    %v1476 = vadd.f32 %v538, %v1412
    %v1477 = vadd.f32 %v541, %v1415
    %v1478 = vadd.f32 %v546, %v1420
    %v1479 = vadd.f32 %v549, %v1423
    %v1480 = vadd.f32 %v554, %v1428
    %v1481 = vadd.f32 %v557, %v1431
    %v1482 = vadd.f32 %v562, %v1436
    %v1483 = vadd.f32 %v565, %v1439
    %v1484 = vadd.f32 %v570, %v1444
    %v1485 = vadd.f32 %v573, %v1447
    %s1486 = scalar_lea.vmem %s2, 84
    %v1487 = vld [vmem:[%s1486] sm:$0xf]
    %v1488 = vld [vmem:[%s1486 + $0x4] sm:$0xf]
    %v1489 = vld [vmem:[%s1486 + $0x8] sm:$0xf]
    %v1493 = vunpack.c.l.b16 %v1487
    %v1494 = vunpack.c.l.b16 %v1488
    %v1495 = vunpack.c.l.b16 %v1489
    %v1496 = vpack.c.b16 %v1494, %v1493
    %v1497 = vpack.c.b16 %v1495, %v1495
    %v1500 = vsel %vm245, %v1497, 0
    %1502 = vmatprep.subr.bf16.mxu0 0
    %1503 = vmatpush1.bf16.msra.mxu0 0
    %1504 = vmatprep.subr.bf16.mxu0 0
    %1505 = vmatpush1.bf16.msra.mxu0 0
    %1506 = vmatprep.subr.bf16.mxu0 0
    %1507 = vmatpush1.bf16.msra.mxu0 0
    %1508 = vmatprep.subr.bf16.mxu0 0
    %1509 = vmatpush1.bf16.msra.mxu0 0
    %1510 = vmatprep.subr.bf16.mxu0 0
    %1511 = vmatpush1.bf16.msra.mxu0 0
    %1512 = vmatprep.subr.bf16.mxu0 0
    %1513 = vmatpush1.bf16.msra.mxu0 0
    %1514 = vmatprep.subr.bf16.mxu0 0
    %1515 = vmatpush1.bf16.msra.mxu0 %v1500
    %1516 = vmatprep.subr.bf16.mxu0 0
    %1517 = vmatpush1.bf16.msra.mxu0 %v1496
    %1518 = vmatprep.subr.bf16.mxu0 0
    %1519 = vmatpush2.bf16.msra.mxu0 0
    %1520 = vmatprep.subr.bf16.mxu0 0
    %1521 = vmatpush2.bf16.msra.mxu0 0
    %1522 = vmatprep.subr.bf16.mxu0 0
    %1523 = vmatpush2.bf16.msra.mxu0 0
    %1524 = vmatprep.subr.bf16.mxu0 0
    %1525 = vmatpush2.bf16.msra.mxu0 0
    %1526 = vmatprep.subr.bf16.mxu0 0
    %1527 = vmatpush2.bf16.msra.mxu0 0
    %1528 = vmatprep.subr.bf16.mxu0 0
    %1529 = vmatpush2.bf16.msra.mxu0 0
    %1530 = vmatprep.subr.bf16.mxu0 0
    %1531 = vmatpush2.bf16.msra.mxu0 0
    %1532 = vmatprep.subr.bf16.mxu0 0
    %1533 = vmatpush2.bf16.msra.mxu0 0
    %1534 = vmatprep.mubr.bf16.mxu0 0
    %1535 = vmatmul.mubr.bf16.gmra.mxu0 %v201
    %v1536 = vpop.f32.mrf.mxu0
    %v1537 = vadd.f32 0.0, %v1536
    %v1538 = vpop.f32.mrf.mxu0
    %v1539 = vpop.f32.mrf.mxu0
    %v1540 = vadd.f32 0.0, %v1539
    %v1541 = vpop.f32.mrf.mxu0
    %1542 = vmatprep.mubr.bf16.mxu0 0
    %1543 = vmatmul.mubr.bf16.gmra.mxu0 %v204
    %v1544 = vpop.f32.mrf.mxu0
    %v1545 = vadd.f32 0.0, %v1544
    %v1546 = vpop.f32.mrf.mxu0
    %v1547 = vpop.f32.mrf.mxu0
    %v1548 = vadd.f32 0.0, %v1547
    %v1549 = vpop.f32.mrf.mxu0
    %1550 = vmatprep.mubr.bf16.mxu0 0
    %1551 = vmatmul.mubr.bf16.gmra.mxu0 %v207
    %v1552 = vpop.f32.mrf.mxu0
    %v1553 = vadd.f32 0.0, %v1552
    %v1554 = vpop.f32.mrf.mxu0
    %v1555 = vpop.f32.mrf.mxu0
    %v1556 = vadd.f32 0.0, %v1555
    %v1557 = vpop.f32.mrf.mxu0
    %1558 = vmatprep.mubr.bf16.mxu0 0
    %1559 = vmatmul.mubr.bf16.gmra.mxu0 %v210
    %v1560 = vpop.f32.mrf.mxu0
    %v1561 = vadd.f32 0.0, %v1560
    %v1562 = vpop.f32.mrf.mxu0
    %v1563 = vpop.f32.mrf.mxu0
    %v1564 = vadd.f32 0.0, %v1563
    %v1565 = vpop.f32.mrf.mxu0
    %1566 = vmatprep.mubr.bf16.mxu0 0
    %1567 = vmatmul.mubr.bf16.gmra.mxu0 %v213
    %v1568 = vpop.f32.mrf.mxu0
    %v1569 = vadd.f32 0.0, %v1568
    %v1570 = vpop.f32.mrf.mxu0
    %v1571 = vpop.f32.mrf.mxu0
    %v1572 = vadd.f32 0.0, %v1571
    %v1573 = vpop.f32.mrf.mxu0
    %1574 = vmatprep.mubr.bf16.mxu0 0
    %1575 = vmatmul.mubr.bf16.gmra.mxu0 %v216
    %v1576 = vpop.f32.mrf.mxu0
    %v1577 = vadd.f32 0.0, %v1576
    %v1578 = vpop.f32.mrf.mxu0
    %v1579 = vpop.f32.mrf.mxu0
    %v1580 = vadd.f32 0.0, %v1579
    %v1581 = vpop.f32.mrf.mxu0
    %1582 = vmatprep.mubr.bf16.mxu0 0
    %1583 = vmatmul.mubr.bf16.gmra.mxu0 %v219
    %v1584 = vpop.f32.mrf.mxu0
    %v1585 = vadd.f32 0.0, %v1584
    %v1586 = vpop.f32.mrf.mxu0
    %v1587 = vpop.f32.mrf.mxu0
    %v1588 = vadd.f32 0.0, %v1587
    %v1589 = vpop.f32.mrf.mxu0
    %1590 = vmatprep.mubr.bf16.mxu0 0
    %1591 = vmatmul.mubr.bf16.gmra.mxu0 %v222
    %v1592 = vpop.f32.mrf.mxu0
    %v1593 = vadd.f32 0.0, %v1592
    %v1594 = vpop.f32.mrf.mxu0
    %v1595 = vpop.f32.mrf.mxu0
    %v1596 = vadd.f32 0.0, %v1595
    %v1597 = vpop.f32.mrf.mxu0
    %1598 = vmatprep.mubr.bf16.mxu0 0
    %1599 = vmatmul.mubr.bf16.gmra.mxu0 %v225
    %v1600 = vpop.f32.mrf.mxu0
    %v1601 = vadd.f32 0.0, %v1600
    %v1602 = vpop.f32.mrf.mxu0
    %v1603 = vpop.f32.mrf.mxu0
    %v1604 = vadd.f32 0.0, %v1603
    %v1605 = vpop.f32.mrf.mxu0
    %1606 = vmatprep.mubr.bf16.mxu0 0
    %1607 = vmatmul.mubr.bf16.gmra.mxu0 %v228
    %v1608 = vpop.f32.mrf.mxu0
    %v1609 = vadd.f32 0.0, %v1608
    %v1610 = vpop.f32.mrf.mxu0
    %v1611 = vpop.f32.mrf.mxu0
    %v1612 = vadd.f32 0.0, %v1611
    %v1613 = vpop.f32.mrf.mxu0
    %1614 = vmatprep.mubr.bf16.mxu0 0
    %1615 = vmatmul.mubr.bf16.gmra.mxu0 %v231
    %v1616 = vpop.f32.mrf.mxu0
    %v1617 = vadd.f32 0.0, %v1616
    %v1618 = vpop.f32.mrf.mxu0
    %v1619 = vpop.f32.mrf.mxu0
    %v1620 = vadd.f32 0.0, %v1619
    %v1621 = vpop.f32.mrf.mxu0
    %1622 = vmatprep.mubr.bf16.mxu0 0
    %1623 = vmatmul.mubr.bf16.gmra.mxu0 %v234
    %v1624 = vpop.f32.mrf.mxu0
    %v1625 = vadd.f32 0.0, %v1624
    %v1626 = vpop.f32.mrf.mxu0
    %v1627 = vpop.f32.mrf.mxu0
    %v1628 = vadd.f32 0.0, %v1627
    %v1629 = vpop.f32.mrf.mxu0
    %1630 = vmatprep.mubr.bf16.mxu0 0
    %1631 = vmatmul.mubr.bf16.gmra.mxu0 %v237
    %v1632 = vpop.f32.mrf.mxu0
    %v1633 = vadd.f32 0.0, %v1632
    %v1634 = vpop.f32.mrf.mxu0
    %v1635 = vpop.f32.mrf.mxu0
    %v1636 = vadd.f32 0.0, %v1635
    %v1637 = vpop.f32.mrf.mxu0
    %1638 = vmatprep.mubr.bf16.mxu0 0
    %1639 = vmatmul.mubr.bf16.gmra.mxu0 %v240
    %v1640 = vpop.f32.mrf.mxu0
    %v1641 = vadd.f32 0.0, %v1640
    %v1642 = vpop.f32.mrf.mxu0
    %v1643 = vpop.f32.mrf.mxu0
    %v1644 = vadd.f32 0.0, %v1643
    %v1645 = vpop.f32.mrf.mxu0
    %1646 = vmatprep.mubr.bf16.mxu0 0
    %1647 = vmatmul.mubr.bf16.gmra.mxu0 %v243
    %v1648 = vpop.f32.mrf.mxu0
    %v1649 = vadd.f32 0.0, %v1648
    %v1650 = vpop.f32.mrf.mxu0
    %v1651 = vpop.f32.mrf.mxu0
    %v1652 = vadd.f32 0.0, %v1651
    %v1653 = vpop.f32.mrf.mxu0
    %1654 = vmatprep.mubr.bf16.mxu0 0
    %1655 = vmatmul.mubr.bf16.gmra.mxu0 %v1292
    %v1656 = vpop.f32.mrf.mxu0
    %v1657 = vadd.f32 0.0, %v1656
    %v1658 = vpop.f32.mrf.mxu0
    %v1659 = vpop.f32.mrf.mxu0
    %v1660 = vpop.f32.mrf.mxu0
    %1661 = vdwg.mxu0
    %v1662 = vadd.f32 %v805, %v1537
    %v1663 = vadd.f32 %v808, %v1540
    %v1664 = vadd.f32 %v813, %v1545
    %v1665 = vadd.f32 %v816, %v1548
    %v1666 = vadd.f32 %v821, %v1553
    %v1667 = vadd.f32 %v824, %v1556
    %v1668 = vadd.f32 %v829, %v1561
    %v1669 = vadd.f32 %v832, %v1564
    %v1670 = vadd.f32 %v837, %v1569
    %v1671 = vadd.f32 %v840, %v1572
    %v1672 = vadd.f32 %v845, %v1577
    %v1673 = vadd.f32 %v848, %v1580
    %v1674 = vadd.f32 %v853, %v1585
    %v1675 = vadd.f32 %v856, %v1588
    %v1676 = vadd.f32 %v861, %v1593
    %v1677 = vadd.f32 %v864, %v1596
    %v1678 = vadd.f32 %v869, %v1601
    %v1679 = vadd.f32 %v872, %v1604
    %v1680 = vadd.f32 %v877, %v1609
    %v1681 = vadd.f32 %v880, %v1612
    %v1682 = vadd.f32 %v885, %v1617
    %v1683 = vadd.f32 %v888, %v1620
    %v1684 = vadd.f32 %v893, %v1625
    %v1685 = vadd.f32 %v896, %v1628
    %v1686 = vadd.f32 %v901, %v1633
    %v1687 = vadd.f32 %v904, %v1636
    %v1688 = vadd.f32 %v909, %v1641
    %v1689 = vadd.f32 %v912, %v1644
    %v1690 = vadd.f32 %v917, %v1649
    %v1691 = vadd.f32 %v920, %v1652
    %v1692 = vadd.f32 %v925, %v1657
    %s1693 = scalar_lea.vmem %s2, 96
    %v1694 = vld [vmem:[%s1693] sm:$0xf]
    %v1695 = vld [vmem:[%s1693 + $0x4] sm:$0xf]
    %v1696 = vld [vmem:[%s1693 + $0x8] sm:$0xf]
    %v1700 = vunpack.c.l.b16 %v1694
    %v1701 = vunpack.c.l.b16 %v1695
    %v1702 = vunpack.c.l.b16 %v1696
    %v1703 = vpack.c.b16 %v1701, %v1700
    %v1704 = vpack.c.b16 %v1702, %v1702
    %v1707 = vsel %vm245, %v1704, 0
    %1709 = vmatprep.subr.bf16.mxu0 0
    %1710 = vmatpush1.bf16.msra.mxu0 0
    %1711 = vmatprep.subr.bf16.mxu0 0
    %1712 = vmatpush1.bf16.msra.mxu0 0
    %1713 = vmatprep.subr.bf16.mxu0 0
    %1714 = vmatpush1.bf16.msra.mxu0 0
    %1715 = vmatprep.subr.bf16.mxu0 0
    %1716 = vmatpush1.bf16.msra.mxu0 0
    %1717 = vmatprep.subr.bf16.mxu0 0
    %1718 = vmatpush1.bf16.msra.mxu0 0
    %1719 = vmatprep.subr.bf16.mxu0 0
    %1720 = vmatpush1.bf16.msra.mxu0 0
    %1721 = vmatprep.subr.bf16.mxu0 0
    %1722 = vmatpush1.bf16.msra.mxu0 %v1707
    %1723 = vmatprep.subr.bf16.mxu0 0
    %1724 = vmatpush1.bf16.msra.mxu0 %v1703
    %1725 = vmatprep.subr.bf16.mxu0 0
    %1726 = vmatpush2.bf16.msra.mxu0 0
    %1727 = vmatprep.subr.bf16.mxu0 0
    %1728 = vmatpush2.bf16.msra.mxu0 0
    %1729 = vmatprep.subr.bf16.mxu0 0
    %1730 = vmatpush2.bf16.msra.mxu0 0
    %1731 = vmatprep.subr.bf16.mxu0 0
    %1732 = vmatpush2.bf16.msra.mxu0 0
    %1733 = vmatprep.subr.bf16.mxu0 0
    %1734 = vmatpush2.bf16.msra.mxu0 0
    %1735 = vmatprep.subr.bf16.mxu0 0
    %1736 = vmatpush2.bf16.msra.mxu0 0
    %1737 = vmatprep.subr.bf16.mxu0 0
    %1738 = vmatpush2.bf16.msra.mxu0 0
    %1739 = vmatprep.subr.bf16.mxu0 0
    %1740 = vmatpush2.bf16.msra.mxu0 0
    %1741 = vmatprep.mubr.bf16.mxu0 0
    %1742 = vmatmul.mubr.bf16.gmra.mxu0 %v201
    %v1743 = vpop.f32.mrf.mxu0
    %v1744 = vadd.f32 0.0, %v1743
    %v1745 = vpop.f32.mrf.mxu0
    %v1746 = vpop.f32.mrf.mxu0
    %v1747 = vadd.f32 0.0, %v1746
    %v1748 = vpop.f32.mrf.mxu0
    %1749 = vmatprep.mubr.bf16.mxu0 0
    %1750 = vmatmul.mubr.bf16.gmra.mxu0 %v204
    %v1751 = vpop.f32.mrf.mxu0
    %v1752 = vadd.f32 0.0, %v1751
    %v1753 = vpop.f32.mrf.mxu0
    %v1754 = vpop.f32.mrf.mxu0
    %v1755 = vadd.f32 0.0, %v1754
    %v1756 = vpop.f32.mrf.mxu0
    %1757 = vmatprep.mubr.bf16.mxu0 0
    %1758 = vmatmul.mubr.bf16.gmra.mxu0 %v207
    %v1759 = vpop.f32.mrf.mxu0
    %v1760 = vadd.f32 0.0, %v1759
    %v1761 = vpop.f32.mrf.mxu0
    %v1762 = vpop.f32.mrf.mxu0
    %v1763 = vadd.f32 0.0, %v1762
    %v1764 = vpop.f32.mrf.mxu0
    %1765 = vmatprep.mubr.bf16.mxu0 0
    %1766 = vmatmul.mubr.bf16.gmra.mxu0 %v210
    %v1767 = vpop.f32.mrf.mxu0
    %v1768 = vadd.f32 0.0, %v1767
    %v1769 = vpop.f32.mrf.mxu0
    %v1770 = vpop.f32.mrf.mxu0
    %v1771 = vadd.f32 0.0, %v1770
    %v1772 = vpop.f32.mrf.mxu0
    %1773 = vmatprep.mubr.bf16.mxu0 0
    %1774 = vmatmul.mubr.bf16.gmra.mxu0 %v213
    %v1775 = vpop.f32.mrf.mxu0
    %v1776 = vadd.f32 0.0, %v1775
    %v1777 = vpop.f32.mrf.mxu0
    %v1778 = vpop.f32.mrf.mxu0
    %v1779 = vadd.f32 0.0, %v1778
    %v1780 = vpop.f32.mrf.mxu0
    %1781 = vmatprep.mubr.bf16.mxu0 0
    %1782 = vmatmul.mubr.bf16.gmra.mxu0 %v216
    %v1783 = vpop.f32.mrf.mxu0
    %v1784 = vadd.f32 0.0, %v1783
    %v1785 = vpop.f32.mrf.mxu0
    %v1786 = vpop.f32.mrf.mxu0
    %v1787 = vadd.f32 0.0, %v1786
    %v1788 = vpop.f32.mrf.mxu0
    %1789 = vmatprep.mubr.bf16.mxu0 0
    %1790 = vmatmul.mubr.bf16.gmra.mxu0 %v219
    %v1791 = vpop.f32.mrf.mxu0
    %v1792 = vadd.f32 0.0, %v1791
    %v1793 = vpop.f32.mrf.mxu0
    %v1794 = vpop.f32.mrf.mxu0
    %v1795 = vadd.f32 0.0, %v1794
    %v1796 = vpop.f32.mrf.mxu0
    %1797 = vmatprep.mubr.bf16.mxu0 0
    %1798 = vmatmul.mubr.bf16.gmra.mxu0 %v222
    %v1799 = vpop.f32.mrf.mxu0
    %v1800 = vadd.f32 0.0, %v1799
    %v1801 = vpop.f32.mrf.mxu0
    %v1802 = vpop.f32.mrf.mxu0
    %v1803 = vadd.f32 0.0, %v1802
    %v1804 = vpop.f32.mrf.mxu0
    %1805 = vmatprep.mubr.bf16.mxu0 0
    %1806 = vmatmul.mubr.bf16.gmra.mxu0 %v225
    %v1807 = vpop.f32.mrf.mxu0
    %v1808 = vadd.f32 0.0, %v1807
    %v1809 = vpop.f32.mrf.mxu0
    %v1810 = vpop.f32.mrf.mxu0
    %v1811 = vadd.f32 0.0, %v1810
    %v1812 = vpop.f32.mrf.mxu0
    %1813 = vmatprep.mubr.bf16.mxu0 0
    %1814 = vmatmul.mubr.bf16.gmra.mxu0 %v228
    %v1815 = vpop.f32.mrf.mxu0
    %v1816 = vadd.f32 0.0, %v1815
    %v1817 = vpop.f32.mrf.mxu0
    %v1818 = vpop.f32.mrf.mxu0
    %v1819 = vadd.f32 0.0, %v1818
    %v1820 = vpop.f32.mrf.mxu0
    %1821 = vmatprep.mubr.bf16.mxu0 0
    %1822 = vmatmul.mubr.bf16.gmra.mxu0 %v231
    %v1823 = vpop.f32.mrf.mxu0
    %v1824 = vadd.f32 0.0, %v1823
    %v1825 = vpop.f32.mrf.mxu0
    %v1826 = vpop.f32.mrf.mxu0
    %v1827 = vadd.f32 0.0, %v1826
    %v1828 = vpop.f32.mrf.mxu0
    %1829 = vmatprep.mubr.bf16.mxu0 0
    %1830 = vmatmul.mubr.bf16.gmra.mxu0 %v234
    %v1831 = vpop.f32.mrf.mxu0
    %v1832 = vadd.f32 0.0, %v1831
    %v1833 = vpop.f32.mrf.mxu0
    %v1834 = vpop.f32.mrf.mxu0
    %v1835 = vadd.f32 0.0, %v1834
    %v1836 = vpop.f32.mrf.mxu0
    %1837 = vmatprep.mubr.bf16.mxu0 0
    %1838 = vmatmul.mubr.bf16.gmra.mxu0 %v237
    %v1839 = vpop.f32.mrf.mxu0
    %v1840 = vadd.f32 0.0, %v1839
    %v1841 = vpop.f32.mrf.mxu0
    %v1842 = vpop.f32.mrf.mxu0
    %v1843 = vadd.f32 0.0, %v1842
    %v1844 = vpop.f32.mrf.mxu0
    %1845 = vmatprep.mubr.bf16.mxu0 0
    %1846 = vmatmul.mubr.bf16.gmra.mxu0 %v240
    %v1847 = vpop.f32.mrf.mxu0
    %v1848 = vadd.f32 0.0, %v1847
    %v1849 = vpop.f32.mrf.mxu0
    %v1850 = vpop.f32.mrf.mxu0
    %v1851 = vadd.f32 0.0, %v1850
    %v1852 = vpop.f32.mrf.mxu0
    %1853 = vmatprep.mubr.bf16.mxu0 0
    %1854 = vmatmul.mubr.bf16.gmra.mxu0 %v243
    %v1855 = vpop.f32.mrf.mxu0
    %v1856 = vadd.f32 0.0, %v1855
    %v1857 = vpop.f32.mrf.mxu0
    %v1858 = vpop.f32.mrf.mxu0
    %v1859 = vadd.f32 0.0, %v1858
    %v1860 = vpop.f32.mrf.mxu0
    %1861 = vmatprep.mubr.bf16.mxu0 0
    %1862 = vmatmul.mubr.bf16.gmra.mxu0 %v1292
    %v1863 = vpop.f32.mrf.mxu0
    %v1864 = vadd.f32 0.0, %v1863
    %v1865 = vpop.f32.mrf.mxu0
    %v1866 = vpop.f32.mrf.mxu0
    %v1867 = vpop.f32.mrf.mxu0
    %1868 = vdwg.mxu0
    %v1869 = vadd.f32 %v1153, %v1744
    %v1870 = vadd.f32 %v1156, %v1747
    %v1871 = vadd.f32 %v1161, %v1752
    %v1872 = vadd.f32 %v1164, %v1755
    %v1873 = vadd.f32 %v1169, %v1760
    %v1874 = vadd.f32 %v1172, %v1763
    %v1875 = vadd.f32 %v1177, %v1768
    %v1876 = vadd.f32 %v1180, %v1771
    %v1877 = vadd.f32 %v1185, %v1776
    %v1878 = vadd.f32 %v1188, %v1779
    %v1879 = vadd.f32 %v1193, %v1784
    %v1880 = vadd.f32 %v1196, %v1787
    %v1881 = vadd.f32 %v1201, %v1792
    %v1882 = vadd.f32 %v1204, %v1795
    %v1883 = vadd.f32 %v1209, %v1800
    %v1884 = vadd.f32 %v1212, %v1803
    %v1885 = vadd.f32 %v1217, %v1808
    %v1886 = vadd.f32 %v1220, %v1811
    %v1887 = vadd.f32 %v1225, %v1816
    %v1888 = vadd.f32 %v1228, %v1819
    %v1889 = vadd.f32 %v1233, %v1824
    %v1890 = vadd.f32 %v1236, %v1827
    %v1891 = vadd.f32 %v1241, %v1832
    %v1892 = vadd.f32 %v1244, %v1835
    %v1893 = vadd.f32 %v1249, %v1840
    %v1894 = vadd.f32 %v1252, %v1843
    %v1895 = vadd.f32 %v1257, %v1848
    %v1896 = vadd.f32 %v1260, %v1851
    %v1897 = vadd.f32 %v1265, %v1856
    %v1898 = vadd.f32 %v1268, %v1859
    %v1899 = vadd.f32 %v1273, %v1864
    %vm1931 = vcmask 1046528
    %v1932 = vrot.slane %v1662, 1
    %v1933 = vrot.slane %v1663, 1
    %v1934 = vsel %vm1931, %v1932, %v1933
    %v1935 = vrot.slane %v1664, 1
    %v1936 = vsel %vm1931, %v1933, %v1935
    %v1937 = vrot.slane %v1665, 1
    %v1938 = vsel %vm1931, %v1935, %v1937
    %v1939 = vrot.slane %v1666, 1
    %v1940 = vsel %vm1931, %v1937, %v1939
    %v1941 = vrot.slane %v1667, 1
    %v1942 = vsel %vm1931, %v1939, %v1941
    %v1943 = vrot.slane %v1668, 1
    %v1944 = vsel %vm1931, %v1941, %v1943
    %v1945 = vrot.slane %v1669, 1
    %v1946 = vsel %vm1931, %v1943, %v1945
    %v1947 = vrot.slane %v1670, 1
    %v1948 = vsel %vm1931, %v1945, %v1947
    %v1949 = vrot.slane %v1671, 1
    %v1950 = vsel %vm1931, %v1947, %v1949
    %v1951 = vrot.slane %v1672, 1
    %v1952 = vsel %vm1931, %v1949, %v1951
    %v1953 = vrot.slane %v1673, 1
    %v1954 = vsel %vm1931, %v1951, %v1953
    %v1955 = vrot.slane %v1674, 1
    %v1956 = vsel %vm1931, %v1953, %v1955
    %v1957 = vrot.slane %v1675, 1
    %v1958 = vsel %vm1931, %v1955, %v1957
    %v1959 = vrot.slane %v1676, 1
    %v1960 = vsel %vm1931, %v1957, %v1959
    %v1961 = vrot.slane %v1677, 1
    %v1962 = vsel %vm1931, %v1959, %v1961
    %v1963 = vrot.slane %v1678, 1
    %v1964 = vsel %vm1931, %v1961, %v1963
    %v1965 = vrot.slane %v1679, 1
    %v1966 = vsel %vm1931, %v1963, %v1965
    %v1967 = vrot.slane %v1680, 1
    %v1968 = vsel %vm1931, %v1965, %v1967
    %v1969 = vrot.slane %v1681, 1
    %v1970 = vsel %vm1931, %v1967, %v1969
    %v1971 = vrot.slane %v1682, 1
    %v1972 = vsel %vm1931, %v1969, %v1971
    %v1973 = vrot.slane %v1683, 1
    %v1974 = vsel %vm1931, %v1971, %v1973
    %v1975 = vrot.slane %v1684, 1
    %v1976 = vsel %vm1931, %v1973, %v1975
    %v1977 = vrot.slane %v1685, 1
    %v1978 = vsel %vm1931, %v1975, %v1977
    %v1979 = vrot.slane %v1686, 1
    %v1980 = vsel %vm1931, %v1977, %v1979
    %v1981 = vrot.slane %v1687, 1
    %v1982 = vsel %vm1931, %v1979, %v1981
    %v1983 = vrot.slane %v1688, 1
    %v1984 = vsel %vm1931, %v1981, %v1983
    %v1985 = vrot.slane %v1689, 1
    %v1986 = vsel %vm1931, %v1983, %v1985
    %v1987 = vrot.slane %v1690, 1
    %v1988 = vsel %vm1931, %v1985, %v1987
    %v1989 = vrot.slane %v1691, 1
    %v1990 = vsel %vm1931, %v1987, %v1989
    %v1991 = vrot.slane %v1692, 1
    %v1992 = vsel %vm1931, %v1989, %v1991
    %v2023 = vadd.f32 %v1456, %v1934
    %v2024 = vadd.f32 %v1457, %v1936
    %v2025 = vadd.f32 %v1458, %v1938
    %v2026 = vadd.f32 %v1459, %v1940
    %v2027 = vadd.f32 %v1460, %v1942
    %v2028 = vadd.f32 %v1461, %v1944
    %v2029 = vadd.f32 %v1462, %v1946
    %v2030 = vadd.f32 %v1463, %v1948
    %v2031 = vadd.f32 %v1464, %v1950
    %v2032 = vadd.f32 %v1465, %v1952
    %v2033 = vadd.f32 %v1466, %v1954
    %v2034 = vadd.f32 %v1467, %v1956
    %v2035 = vadd.f32 %v1468, %v1958
    %v2036 = vadd.f32 %v1469, %v1960
    %v2037 = vadd.f32 %v1470, %v1962
    %v2038 = vadd.f32 %v1471, %v1964
    %v2039 = vadd.f32 %v1472, %v1966
    %v2040 = vadd.f32 %v1473, %v1968
    %v2041 = vadd.f32 %v1474, %v1970
    %v2042 = vadd.f32 %v1475, %v1972
    %v2043 = vadd.f32 %v1476, %v1974
    %v2044 = vadd.f32 %v1477, %v1976
    %v2045 = vadd.f32 %v1478, %v1978
    %v2046 = vadd.f32 %v1479, %v1980
    %v2047 = vadd.f32 %v1480, %v1982
    %v2048 = vadd.f32 %v1481, %v1984
    %v2049 = vadd.f32 %v1482, %v1986
    %v2050 = vadd.f32 %v1483, %v1988
    %v2051 = vadd.f32 %v1484, %v1990
    %v2052 = vadd.f32 %v1485, %v1992
    %vm2084 = vcmask 1045504
    %v2085 = vrot.slane %v1869, 2
    %v2086 = vrot.slane %v1870, 2
    %v2087 = vsel %vm2084, %v2085, %v2086
    %v2088 = vrot.slane %v1871, 2
    %v2089 = vsel %vm2084, %v2086, %v2088
    %v2090 = vrot.slane %v1872, 2
    %v2091 = vsel %vm2084, %v2088, %v2090
    %v2092 = vrot.slane %v1873, 2
    %v2093 = vsel %vm2084, %v2090, %v2092
    %v2094 = vrot.slane %v1874, 2
    %v2095 = vsel %vm2084, %v2092, %v2094
    %v2096 = vrot.slane %v1875, 2
    %v2097 = vsel %vm2084, %v2094, %v2096
    %v2098 = vrot.slane %v1876, 2
    %v2099 = vsel %vm2084, %v2096, %v2098
    %v2100 = vrot.slane %v1877, 2
    %v2101 = vsel %vm2084, %v2098, %v2100
    %v2102 = vrot.slane %v1878, 2
    %v2103 = vsel %vm2084, %v2100, %v2102
    %v2104 = vrot.slane %v1879, 2
    %v2105 = vsel %vm2084, %v2102, %v2104
    %v2106 = vrot.slane %v1880, 2
    %v2107 = vsel %vm2084, %v2104, %v2106
    %v2108 = vrot.slane %v1881, 2
    %v2109 = vsel %vm2084, %v2106, %v2108
    %v2110 = vrot.slane %v1882, 2
    %v2111 = vsel %vm2084, %v2108, %v2110
    %v2112 = vrot.slane %v1883, 2
    %v2113 = vsel %vm2084, %v2110, %v2112
    %v2114 = vrot.slane %v1884, 2
    %v2115 = vsel %vm2084, %v2112, %v2114
    %v2116 = vrot.slane %v1885, 2
    %v2117 = vsel %vm2084, %v2114, %v2116
    %v2118 = vrot.slane %v1886, 2
    %v2119 = vsel %vm2084, %v2116, %v2118
    %v2120 = vrot.slane %v1887, 2
    %v2121 = vsel %vm2084, %v2118, %v2120
    %v2122 = vrot.slane %v1888, 2
    %v2123 = vsel %vm2084, %v2120, %v2122
    %v2124 = vrot.slane %v1889, 2
    %v2125 = vsel %vm2084, %v2122, %v2124
    %v2126 = vrot.slane %v1890, 2
    %v2127 = vsel %vm2084, %v2124, %v2126
    %v2128 = vrot.slane %v1891, 2
    %v2129 = vsel %vm2084, %v2126, %v2128
    %v2130 = vrot.slane %v1892, 2
    %v2131 = vsel %vm2084, %v2128, %v2130
    %v2132 = vrot.slane %v1893, 2
    %v2133 = vsel %vm2084, %v2130, %v2132
    %v2134 = vrot.slane %v1894, 2
    %v2135 = vsel %vm2084, %v2132, %v2134
    %v2136 = vrot.slane %v1895, 2
    %v2137 = vsel %vm2084, %v2134, %v2136
    %v2138 = vrot.slane %v1896, 2
    %v2139 = vsel %vm2084, %v2136, %v2138
    %v2140 = vrot.slane %v1897, 2
    %v2141 = vsel %vm2084, %v2138, %v2140
    %v2142 = vrot.slane %v1898, 2
    %v2143 = vsel %vm2084, %v2140, %v2142
    %v2144 = vrot.slane %v1899, 2
    %v2145 = vsel %vm2084, %v2142, %v2144
    %v2176 = vadd.f32 %v2023, %v2087
    %v2177 = vadd.f32 %v2024, %v2089
    %v2178 = vadd.f32 %v2025, %v2091
    %v2179 = vadd.f32 %v2026, %v2093
    %v2180 = vadd.f32 %v2027, %v2095
    %v2181 = vadd.f32 %v2028, %v2097
    %v2182 = vadd.f32 %v2029, %v2099
    %v2183 = vadd.f32 %v2030, %v2101
    %v2184 = vadd.f32 %v2031, %v2103
    %v2185 = vadd.f32 %v2032, %v2105
    %v2186 = vadd.f32 %v2033, %v2107
    %v2187 = vadd.f32 %v2034, %v2109
    %v2188 = vadd.f32 %v2035, %v2111
    %v2189 = vadd.f32 %v2036, %v2113
    %v2190 = vadd.f32 %v2037, %v2115
    %v2191 = vadd.f32 %v2038, %v2117
    %v2192 = vadd.f32 %v2039, %v2119
    %v2193 = vadd.f32 %v2040, %v2121
    %v2194 = vadd.f32 %v2041, %v2123
    %v2195 = vadd.f32 %v2042, %v2125
    %v2196 = vadd.f32 %v2043, %v2127
    %v2197 = vadd.f32 %v2044, %v2129
    %v2198 = vadd.f32 %v2045, %v2131
    %v2199 = vadd.f32 %v2046, %v2133
    %v2200 = vadd.f32 %v2047, %v2135
    %v2201 = vadd.f32 %v2048, %v2137
    %v2202 = vadd.f32 %v2049, %v2139
    %v2203 = vadd.f32 %v2050, %v2141
    %v2204 = vadd.f32 %v2051, %v2143
    %v2205 = vadd.f32 %v2052, %v2145
    %v2206 = vld [vmem:[%s3] sm:$0x1]
    %v2208 = vlaneseq
    %v2209 = vshrl.u32 %v2208, 7
    %v2210 = vsub.s32 0, %v2209
    %v2211 = vrot.slane %v2206, %v2210
    %v2213 = vadd.f32 %v2176, %v2211
    %v2214 = vadd.f32 %v2177, %v2211
    %v2215 = vadd.f32 %v2178, %v2211
    %v2216 = vadd.f32 %v2179, %v2211
    %v2217 = vadd.f32 %v2180, %v2211
    %v2218 = vadd.f32 %v2181, %v2211
    %v2219 = vadd.f32 %v2182, %v2211
    %v2220 = vadd.f32 %v2183, %v2211
    %v2221 = vadd.f32 %v2184, %v2211
    %v2222 = vadd.f32 %v2185, %v2211
    %v2223 = vadd.f32 %v2186, %v2211
    %v2224 = vadd.f32 %v2187, %v2211
    %v2225 = vadd.f32 %v2188, %v2211
    %v2226 = vadd.f32 %v2189, %v2211
    %v2227 = vadd.f32 %v2190, %v2211
    %v2228 = vadd.f32 %v2191, %v2211
    %v2229 = vadd.f32 %v2192, %v2211
    %v2230 = vadd.f32 %v2193, %v2211
    %v2231 = vadd.f32 %v2194, %v2211
    %v2232 = vadd.f32 %v2195, %v2211
    %v2233 = vadd.f32 %v2196, %v2211
    %v2234 = vadd.f32 %v2197, %v2211
    %v2235 = vadd.f32 %v2198, %v2211
    %v2236 = vadd.f32 %v2199, %v2211
    %v2237 = vadd.f32 %v2200, %v2211
    %v2238 = vadd.f32 %v2201, %v2211
    %v2239 = vadd.f32 %v2202, %v2211
    %v2240 = vadd.f32 %v2203, %v2211
    %v2241 = vadd.f32 %v2204, %v2211
    %v2242 = vadd.f32 %v2205, %v2211
    %v2243 = vmax.f32 %v2213, 0.0
    %v2244 = vmax.f32 %v2214, 0.0
    %v2245 = vmax.f32 %v2215, 0.0
    %v2246 = vmax.f32 %v2216, 0.0
    %v2247 = vmax.f32 %v2217, 0.0
    %v2248 = vmax.f32 %v2218, 0.0
    %v2249 = vmax.f32 %v2219, 0.0
    %v2250 = vmax.f32 %v2220, 0.0
    %v2251 = vmax.f32 %v2221, 0.0
    %v2252 = vmax.f32 %v2222, 0.0
    %v2253 = vmax.f32 %v2223, 0.0
    %v2254 = vmax.f32 %v2224, 0.0
    %v2255 = vmax.f32 %v2225, 0.0
    %v2256 = vmax.f32 %v2226, 0.0
    %v2257 = vmax.f32 %v2227, 0.0
    %v2258 = vmax.f32 %v2228, 0.0
    %v2259 = vmax.f32 %v2229, 0.0
    %v2260 = vmax.f32 %v2230, 0.0
    %v2261 = vmax.f32 %v2231, 0.0
    %v2262 = vmax.f32 %v2232, 0.0
    %v2263 = vmax.f32 %v2233, 0.0
    %v2264 = vmax.f32 %v2234, 0.0
    %v2265 = vmax.f32 %v2235, 0.0
    %v2266 = vmax.f32 %v2236, 0.0
    %v2267 = vmax.f32 %v2237, 0.0
    %v2268 = vmax.f32 %v2238, 0.0
    %v2269 = vmax.f32 %v2239, 0.0
    %v2270 = vmax.f32 %v2240, 0.0
    %v2271 = vmax.f32 %v2241, 0.0
    %v2272 = vmax.f32 %v2242, 0.0
    %2273 = vst [vmem:[#allocation2] sm:$0xff] %v2243
    %2274 = vst [vmem:[#allocation2 + $0x8] sm:$0xff] %v2244
    %2275 = vst [vmem:[#allocation2 + $0x10] sm:$0xff] %v2245
    %2276 = vst [vmem:[#allocation2 + $0x18] sm:$0xff] %v2246
    %2277 = vst [vmem:[#allocation2 + $0x20] sm:$0xff] %v2247
    %2278 = vst [vmem:[#allocation2 + $0x28] sm:$0xff] %v2248
    %2279 = vst [vmem:[#allocation2 + $0x30] sm:$0xff] %v2249
    %2280 = vst [vmem:[#allocation2 + $0x38] sm:$0xff] %v2250
    %2281 = vst [vmem:[#allocation2 + $0x40] sm:$0xff] %v2251
    %2282 = vst [vmem:[#allocation2 + $0x48] sm:$0xff] %v2252
    %2283 = vst [vmem:[#allocation2 + $0x50] sm:$0xff] %v2253
    %2284 = vst [vmem:[#allocation2 + $0x58] sm:$0xff] %v2254
    %2285 = vst [vmem:[#allocation2 + $0x60] sm:$0xff] %v2255
    %2286 = vst [vmem:[#allocation2 + $0x68] sm:$0xff] %v2256
    %2287 = vst [vmem:[#allocation2 + $0x70] sm:$0xff] %v2257
    %2288 = vst [vmem:[#allocation2 + $0x78] sm:$0xff] %v2258
    %2289 = vst [vmem:[#allocation2 + $0x80] sm:$0xff] %v2259
    %2290 = vst [vmem:[#allocation2 + $0x88] sm:$0xff] %v2260
    %2291 = vst [vmem:[#allocation2 + $0x90] sm:$0xff] %v2261
    %2292 = vst [vmem:[#allocation2 + $0x98] sm:$0xff] %v2262
    %2293 = vst [vmem:[#allocation2 + $0xa0] sm:$0xff] %v2263
    %2294 = vst [vmem:[#allocation2 + $0xa8] sm:$0xff] %v2264
    %2295 = vst [vmem:[#allocation2 + $0xb0] sm:$0xff] %v2265
    %2296 = vst [vmem:[#allocation2 + $0xb8] sm:$0xff] %v2266
    %2297 = vst [vmem:[#allocation2 + $0xc0] sm:$0xff] %v2267
    %2298 = vst [vmem:[#allocation2 + $0xc8] sm:$0xff] %v2268
    %2299 = vst [vmem:[#allocation2 + $0xd0] sm:$0xff] %v2269
    %2300 = vst [vmem:[#allocation2 + $0xd8] sm:$0xff] %v2270
    %2301 = vst [vmem:[#allocation2 + $0xe0] sm:$0xff] %v2271
    %2302 = vst [vmem:[#allocation2 + $0xe8] sm:$0xff] %v2272
    // Predicated region
    $region18: #{tpu_custom_call.1} parent=1 // pred_check
      _
    $region19: #{tpu_custom_call.1} parent=1 // pred_check_branch
      %2304 = sbr.rel (0) target = $region21
    $region20: #{tpu_custom_call.1} parent=1 // pred_region
      %s2306 = ssub.s32 3840, 3840
      %2307 = vsyncadd [#allocation3], %s2306
      %s2308 = sshll.u32 [#allocation2], 4
      %s2309 = int_to_ptr.vmem [resolvable:$true] %s2308
      %2314 = dma.vmem_to_hbm [thread:$0]  %s2309, 3840, %s4, [#allocation3], 128, 128, 8
    $region21: #{tpu_custom_call.1} parent=1 // pred_fallthru
      _
    // Predicated region
    $region22: #{tpu_custom_call.1} parent=1 // pred_check
      _
    $region23: #{tpu_custom_call.1} parent=1 // pred_check_branch
      %2316 = sbr.rel (0) target = $region25
    $region24: #{tpu_custom_call.1} parent=1 // pred_region
      %2317 = dma.done [#allocation3], 3840
    $region25: #{tpu_custom_call.1} parent=1 // pred_fallthru
      _
    %2318 = vsyncpa [#allocation3], 1

</llo_original>
